<compile_context>
chip_gen: v7x
topology: tpu7x:2x2x1
jax: 0.10.0
libtpu: 0.0.40
codegen_flags: <defaults>
</compile_context>

<pallas_src>
import jax
import jax.numpy as jnp
import numpy as np
from jax.experimental import pallas as pl
from jax.experimental.pallas import tpu as pltpu


def rnn_kernel(x_ref, h0_ref, wih0t_ref, wihrt_ref, whht_ref, b_ref,
               out_ref, hn_ref):
    # x_ref    : (seq_len*batch, input_size)
    # h0_ref   : (n_layers, batch, hidden)
    # wih0t_ref: (input_size, hidden)          == W_ih_l0^T
    # wihrt_ref: (n_layers, hidden, hidden)    == W_ih_l{k}^T (slot 0 unused)
    # whht_ref : (n_layers, hidden, hidden)    == W_hh_l{k}^T
    # b_ref    : (n_layers, 1, hidden)         == b_ih + b_hh (pre-summed)
    # out_ref  : (seq_len*batch, hidden)       rows ordered (t, b)
    # hn_ref   : (n_layers, batch, hidden)
    n_layers, batch, _ = hn_ref.shape
    seq_len = out_ref.shape[0] // batch

    for l in range(n_layers):                      # static, fully unrolled
        # Whole-sequence input projection: one MXU push per layer, off the
        # serial chain. For l > 0 the previous layer's output sequence is
        # still resident in out_ref (VMEM).
        layer_in = x_ref[...] if l == 0 else out_ref[...]
        w_in_t = wih0t_ref[...] if l == 0 else wihrt_ref[l]
        ih = jnp.dot(layer_in, w_in_t,
                     preferred_element_type=jnp.float32) + b_ref[l]

        w_hh_t = whht_ref[l]
        h = h0_ref[l]
        for t in range(seq_len):                   # static, fully unrolled
            hh = jnp.dot(h, w_hh_t, preferred_element_type=jnp.float32)
            h = jnp.tanh(ih[t * batch:(t + 1) * batch, :] + hh)
            out_ref[t * batch:(t + 1) * batch, :] = h   # next layer's input
        hn_ref[l] = h                              # written once per layer


def sentiment_rnn_forward(x, h0, params):
    """Equivalent of SentimentRNN.forward(input, hidden) -> (output, hidden)."""
    seq_len, batch, input_size = x.shape
    n_layers, _, hidden = h0.shape

    # Free-at-trace-time prep: transpose weights, pre-sum biases, flatten x so
    # the kernel only ever does row-major 2D matmuls with static indexing.
    wih0_t = params["w_ih_l0"].T                          # (input, H)
    wihr_t = jnp.swapaxes(params["w_ih_rest"], 1, 2)      # (L, H, H)
    whh_t = jnp.swapaxes(params["w_hh"], 1, 2)            # (L, H, H)
    b = params["b_ih"] + params["b_hh"]                   # (L, 1, H)
    x2d = x.reshape(seq_len * batch, input_size)

    def full(shape):
        nd = len(shape)
        return pl.BlockSpec(shape, lambda i, _nd=nd: (0,) * _nd)

    # TODO(synk): layers/time are inherently serial and batch=2 is too small to
    # tile, so this kernel runs on a single TensorCore (v7x's 2nd TC is idle).
    out2d, hn = pl.pallas_call(
        rnn_kernel,
        out_shape=(jax.ShapeDtypeStruct((seq_len * batch, hidden), jnp.float32),
                   jax.ShapeDtypeStruct((n_layers, batch, hidden), jnp.float32)),
        grid_spec=pltpu.PrefetchScalarGridSpec(
            num_scalar_prefetch=0,
            grid=(1,),
            in_specs=[full(x2d.shape), full(h0.shape), full(wih0_t.shape),
                      full(wihr_t.shape), full(whh_t.shape), full(b.shape)],
            out_specs=(full((seq_len * batch, hidden)),
                       full((n_layers, batch, hidden)))),
        compiler_params=pltpu.CompilerParams(
            dimension_semantics=("arbitrary",)),
    )(x2d, h0, wih0_t, wihr_t, whh_t, b)
    return out2d.reshape(seq_len, batch, hidden), hn


def rnn_reference(x, h0, params):
    """Pure-JAX reference mirroring torch.nn.RNN semantics."""
    n_layers = h0.shape[0]
    outs = x.astype(jnp.float32)
    hn = []
    for l in range(n_layers):
        w_ih = params["w_ih_l0"] if l == 0 else params["w_ih_rest"][l]
        w_hh = params["w_hh"][l]
        b_ih = params["b_ih"][l, 0]
        b_hh = params["b_hh"][l, 0]
        h = h0[l]
        ys = []
        for t in range(x.shape[0]):
            h = jnp.tanh(outs[t] @ w_ih.T + b_ih + h @ w_hh.T + b_hh)
            ys.append(h)
        outs = jnp.stack(ys)
        hn.append(h)
    return outs, jnp.stack(hn)


def init_params(key, input_size, hidden_size, output_size, n_layers):
    """Deterministic init matching nn.RNN / nn.Linear shapes (uniform +-1/sqrt(H))."""
    bound = 1.0 / np.sqrt(hidden_size)
    keys = jax.random.split(key, 8)
    u = lambda k, shape: jax.random.uniform(k, shape, jnp.float32, -bound, bound)
    params = {
        "w_ih_l0": u(keys[0], (hidden_size, input_size)),
        # weight_ih_l{k>0} are (H, H); layer-0 slot present but unused.
        "w_ih_rest": u(keys[1], (n_layers, hidden_size, hidden_size)),
        "w_hh": u(keys[2], (n_layers, hidden_size, hidden_size)),
        "b_ih": u(keys[3], (n_layers, 1, hidden_size)),
        "b_hh": u(keys[4], (n_layers, 1, hidden_size)),
        # decoder (nn.Linear) is constructed in __init__ but never used in forward():
        "decoder_w": u(keys[5], (output_size, hidden_size)),
        "decoder_b": u(keys[6], (output_size,)),
    }
    return params


if __name__ == "__main__":
    # TODO(synk): forward() also contains print(type(input.data), type(hidden.data));
    # that debug print has no kernel equivalent and is intentionally omitted.
    input_size, hidden_size, output_size, n_layers = 16, 32, 2, 2
    seq_len, batch = 8, 2

    key = jax.random.PRNGKey(0)
    k_param, k_x = jax.random.split(key)
    params = init_params(k_param, input_size, hidden_size, output_size, n_layers)

    x = jax.random.normal(k_x, (seq_len, batch, input_size), jnp.float32)
    h0 = jnp.zeros((n_layers, batch, hidden_size), jnp.float32)  # init_hidden()

    out, hn = jax.block_until_ready(sentiment_rnn_forward(x, h0, params))
    out_ref, hn_ref = rnn_reference(x, h0, params)

    np.testing.assert_allclose(np.asarray(out), np.asarray(out_ref), rtol=1e-5, atol=1e-5)
    np.testing.assert_allclose(np.asarray(hn), np.asarray(hn_ref), rtol=1e-5, atol=1e-5)
    print("KERNEL_OK")
</pallas_src>

<mosaic_0001>
module attributes {stable_mosaic.version = 11 : i64} {
  func.func @rnn_kernel(%arg0: i32, %arg1: memref<16x16xf32, #tpu.memory_space<vmem>>, %arg2: memref<2x2x32xf32, #tpu.memory_space<vmem>>, %arg3: memref<16x32xf32, #tpu.memory_space<vmem>>, %arg4: memref<2x32x32xf32, #tpu.memory_space<vmem>>, %arg5: memref<2x32x32xf32, #tpu.memory_space<vmem>>, %arg6: memref<2x1x32xf32, #tpu.memory_space<vmem>>, %arg7: memref<16x32xf32, #tpu.memory_space<vmem>>, %arg8: memref<2x2x32xf32, #tpu.memory_space<vmem>>) attributes {dimension_semantics = [#tpu.dimension_semantics<arbitrary>], iteration_bounds = array<i64: 1>, scalar_prefetch = 0 : i64, scratch_operands = 0 : i64, tpu.core_type = #tpu.core_type<tc>, window_params = [{pipeline_mode = #tpu.pipeline_mode<synchronous>, transform_indices = @transform_0, window_bounds = array<i64: 16, 16>}, {pipeline_mode = #tpu.pipeline_mode<synchronous>, transform_indices = @transform_1, window_bounds = array<i64: 2, 2, 32>}, {pipeline_mode = #tpu.pipeline_mode<synchronous>, transform_indices = @transform_2, window_bounds = array<i64: 16, 32>}, {pipeline_mode = #tpu.pipeline_mode<synchronous>, transform_indices = @transform_3, window_bounds = array<i64: 2, 32, 32>}, {pipeline_mode = #tpu.pipeline_mode<synchronous>, transform_indices = @transform_4, window_bounds = array<i64: 2, 32, 32>}, {pipeline_mode = #tpu.pipeline_mode<synchronous>, transform_indices = @transform_5, window_bounds = array<i64: 2, 1, 32>}, {pipeline_mode = #tpu.pipeline_mode<synchronous>, transform_indices = @transform_6, window_bounds = array<i64: 16, 32>}, {pipeline_mode = #tpu.pipeline_mode<synchronous>, transform_indices = @transform_7, window_bounds = array<i64: 2, 2, 32>}]} {
    %c0 = arith.constant 0 : index
    %c0_0 = arith.constant 0 : index
    %0 = vector.load %arg1[%c0, %c0_0] : memref<16x16xf32, #tpu.memory_space<vmem>>, vector<16x16xf32>
    %c0_1 = arith.constant 0 : index
    %c0_2 = arith.constant 0 : index
    %1 = vector.load %arg3[%c0_1, %c0_2] : memref<16x32xf32, #tpu.memory_space<vmem>>, vector<16x32xf32>
    %cst = arith.constant dense<0.000000e+00> : vector<16x32xf32>
    %2 = tpu.matmul %0, %1, %cst {dimension_numbers = #tpu.dot_dimension_numbers<[1], [0], [0], [1], [0, 0, 1, 1], [], []>} : vector<16x16xf32>, vector<16x32xf32>, vector<16x32xf32> -> vector<16x32xf32>
    %c0_3 = arith.constant 0 : index
    %c0_4 = arith.constant 0 : index
    %c0_5 = arith.constant 0 : index
    %3 = vector.load %arg6[%c0_3, %c0_4, %c0_5] : memref<2x1x32xf32, #tpu.memory_space<vmem>>, vector<1x1x32xf32>
    %4 = vector.shape_cast %3 : vector<1x1x32xf32> to vector<1x32xf32>
    %5 = vector.broadcast %4 : vector<1x32xf32> to vector<16x32xf32>
    %6 = arith.addf %2, %5 : vector<16x32xf32>
    %c0_6 = arith.constant 0 : index
    %c0_7 = arith.constant 0 : index
    %c0_8 = arith.constant 0 : index
    %7 = vector.load %arg5[%c0_6, %c0_7, %c0_8] : memref<2x32x32xf32, #tpu.memory_space<vmem>>, vector<1x32x32xf32>
    %8 = vector.shape_cast %7 : vector<1x32x32xf32> to vector<32x32xf32>
    %c0_9 = arith.constant 0 : index
    %c0_10 = arith.constant 0 : index
    %c0_11 = arith.constant 0 : index
    %9 = vector.load %arg2[%c0_9, %c0_10, %c0_11] : memref<2x2x32xf32, #tpu.memory_space<vmem>>, vector<1x2x32xf32>
    %10 = vector.shape_cast %9 : vector<1x2x32xf32> to vector<2x32xf32>
    %cst_12 = arith.constant dense<0.000000e+00> : vector<2x32xf32>
    %11 = tpu.matmul %10, %8, %cst_12 {dimension_numbers = #tpu.dot_dimension_numbers<[1], [0], [0], [1], [0, 0, 1, 1], [], []>} : vector<2x32xf32>, vector<32x32xf32>, vector<2x32xf32> -> vector<2x32xf32>
    %12 = vector.extract_strided_slice %6 {offsets = [0, 0], sizes = [2, 32], strides = [1, 1]} : vector<16x32xf32> to vector<2x32xf32>
    %13 = arith.addf %12, %11 : vector<2x32xf32>
    %14 = math.tanh %13 : vector<2x32xf32>
    %c0_13 = arith.constant 0 : index
    %c0_14 = arith.constant 0 : index
    %15 = vector.load %arg7[%c0_13, %c0_14] : memref<16x32xf32, #tpu.memory_space<vmem>>, vector<2x32xf32>
    tpu.vector_store %arg7[%c0_13, %c0_14], %14 {strides = array<i32>} : memref<16x32xf32, #tpu.memory_space<vmem>>, vector<2x32xf32>,
    %cst_15 = arith.constant dense<0.000000e+00> : vector<2x32xf32>
    %16 = tpu.matmul %14, %8, %cst_15 {dimension_numbers = #tpu.dot_dimension_numbers<[1], [0], [0], [1], [0, 0, 1, 1], [], []>} : vector<2x32xf32>, vector<32x32xf32>, vector<2x32xf32> -> vector<2x32xf32>
    %17 = vector.extract_strided_slice %6 {offsets = [2, 0], sizes = [2, 32], strides = [1, 1]} : vector<16x32xf32> to vector<2x32xf32>
    %18 = arith.addf %17, %16 : vector<2x32xf32>
    %19 = math.tanh %18 : vector<2x32xf32>
    %c2 = arith.constant 2 : index
    %c0_16 = arith.constant 0 : index
    %20 = vector.load %arg7[%c2, %c0_16] : memref<16x32xf32, #tpu.memory_space<vmem>>, vector<2x32xf32>
    tpu.vector_store %arg7[%c2, %c0_16], %19 {strides = array<i32>} : memref<16x32xf32, #tpu.memory_space<vmem>>, vector<2x32xf32>,
    %cst_17 = arith.constant dense<0.000000e+00> : vector<2x32xf32>
    %21 = tpu.matmul %19, %8, %cst_17 {dimension_numbers = #tpu.dot_dimension_numbers<[1], [0], [0], [1], [0, 0, 1, 1], [], []>} : vector<2x32xf32>, vector<32x32xf32>, vector<2x32xf32> -> vector<2x32xf32>
    %22 = vector.extract_strided_slice %6 {offsets = [4, 0], sizes = [2, 32], strides = [1, 1]} : vector<16x32xf32> to vector<2x32xf32>
    %23 = arith.addf %22, %21 : vector<2x32xf32>
    %24 = math.tanh %23 : vector<2x32xf32>
    %c4 = arith.constant 4 : index
    %c0_18 = arith.constant 0 : index
    %25 = vector.load %arg7[%c4, %c0_18] : memref<16x32xf32, #tpu.memory_space<vmem>>, vector<2x32xf32>
    tpu.vector_store %arg7[%c4, %c0_18], %24 {strides = array<i32>} : memref<16x32xf32, #tpu.memory_space<vmem>>, vector<2x32xf32>,
    %cst_19 = arith.constant dense<0.000000e+00> : vector<2x32xf32>
    %26 = tpu.matmul %24, %8, %cst_19 {dimension_numbers = #tpu.dot_dimension_numbers<[1], [0], [0], [1], [0, 0, 1, 1], [], []>} : vector<2x32xf32>, vector<32x32xf32>, vector<2x32xf32> -> vector<2x32xf32>
    %27 = vector.extract_strided_slice %6 {offsets = [6, 0], sizes = [2, 32], strides = [1, 1]} : vector<16x32xf32> to vector<2x32xf32>
    %28 = arith.addf %27, %26 : vector<2x32xf32>
    %29 = math.tanh %28 : vector<2x32xf32>
    %c6 = arith.constant 6 : index
    %c0_20 = arith.constant 0 : index
    %30 = vector.load %arg7[%c6, %c0_20] : memref<16x32xf32, #tpu.memory_space<vmem>>, vector<2x32xf32>
    tpu.vector_store %arg7[%c6, %c0_20], %29 {strides = array<i32>} : memref<16x32xf32, #tpu.memory_space<vmem>>, vector<2x32xf32>,
    %cst_21 = arith.constant dense<0.000000e+00> : vector<2x32xf32>
    %31 = tpu.matmul %29, %8, %cst_21 {dimension_numbers = #tpu.dot_dimension_numbers<[1], [0], [0], [1], [0, 0, 1, 1], [], []>} : vector<2x32xf32>, vector<32x32xf32>, vector<2x32xf32> -> vector<2x32xf32>
    %32 = vector.extract_strided_slice %6 {offsets = [8, 0], sizes = [2, 32], strides = [1, 1]} : vector<16x32xf32> to vector<2x32xf32>
    %33 = arith.addf %32, %31 : vector<2x32xf32>
    %34 = math.tanh %33 : vector<2x32xf32>
    %c8 = arith.constant 8 : index
    %c0_22 = arith.constant 0 : index
    %35 = vector.load %arg7[%c8, %c0_22] : memref<16x32xf32, #tpu.memory_space<vmem>>, vector<2x32xf32>
    tpu.vector_store %arg7[%c8, %c0_22], %34 {strides = array<i32>} : memref<16x32xf32, #tpu.memory_space<vmem>>, vector<2x32xf32>,
    %cst_23 = arith.constant dense<0.000000e+00> : vector<2x32xf32>
    %36 = tpu.matmul %34, %8, %cst_23 {dimension_numbers = #tpu.dot_dimension_numbers<[1], [0], [0], [1], [0, 0, 1, 1], [], []>} : vector<2x32xf32>, vector<32x32xf32>, vector<2x32xf32> -> vector<2x32xf32>
    %37 = vector.extract_strided_slice %6 {offsets = [10, 0], sizes = [2, 32], strides = [1, 1]} : vector<16x32xf32> to vector<2x32xf32>
    %38 = arith.addf %37, %36 : vector<2x32xf32>
    %39 = math.tanh %38 : vector<2x32xf32>
    %c10 = arith.constant 10 : index
    %c0_24 = arith.constant 0 : index
    %40 = vector.load %arg7[%c10, %c0_24] : memref<16x32xf32, #tpu.memory_space<vmem>>, vector<2x32xf32>
    tpu.vector_store %arg7[%c10, %c0_24], %39 {strides = array<i32>} : memref<16x32xf32, #tpu.memory_space<vmem>>, vector<2x32xf32>,
    %cst_25 = arith.constant dense<0.000000e+00> : vector<2x32xf32>
    %41 = tpu.matmul %39, %8, %cst_25 {dimension_numbers = #tpu.dot_dimension_numbers<[1], [0], [0], [1], [0, 0, 1, 1], [], []>} : vector<2x32xf32>, vector<32x32xf32>, vector<2x32xf32> -> vector<2x32xf32>
    %42 = vector.extract_strided_slice %6 {offsets = [12, 0], sizes = [2, 32], strides = [1, 1]} : vector<16x32xf32> to vector<2x32xf32>
    %43 = arith.addf %42, %41 : vector<2x32xf32>
    %44 = math.tanh %43 : vector<2x32xf32>
    %c12 = arith.constant 12 : index
    %c0_26 = arith.constant 0 : index
    %45 = vector.load %arg7[%c12, %c0_26] : memref<16x32xf32, #tpu.memory_space<vmem>>, vector<2x32xf32>
    tpu.vector_store %arg7[%c12, %c0_26], %44 {strides = array<i32>} : memref<16x32xf32, #tpu.memory_space<vmem>>, vector<2x32xf32>,
    %cst_27 = arith.constant dense<0.000000e+00> : vector<2x32xf32>
    %46 = tpu.matmul %44, %8, %cst_27 {dimension_numbers = #tpu.dot_dimension_numbers<[1], [0], [0], [1], [0, 0, 1, 1], [], []>} : vector<2x32xf32>, vector<32x32xf32>, vector<2x32xf32> -> vector<2x32xf32>
    %47 = vector.extract_strided_slice %6 {offsets = [14, 0], sizes = [2, 32], strides = [1, 1]} : vector<16x32xf32> to vector<2x32xf32>
    %48 = arith.addf %47, %46 : vector<2x32xf32>
    %49 = math.tanh %48 : vector<2x32xf32>
    %c14 = arith.constant 14 : index
    %c0_28 = arith.constant 0 : index
    %50 = vector.load %arg7[%c14, %c0_28] : memref<16x32xf32, #tpu.memory_space<vmem>>, vector<2x32xf32>
    tpu.vector_store %arg7[%c14, %c0_28], %49 {strides = array<i32>} : memref<16x32xf32, #tpu.memory_space<vmem>>, vector<2x32xf32>,
    %c0_29 = arith.constant 0 : index
    %c0_30 = arith.constant 0 : index
    %c0_31 = arith.constant 0 : index
    %51 = vector.load %arg8[%c0_29, %c0_30, %c0_31] : memref<2x2x32xf32, #tpu.memory_space<vmem>>, vector<1x2x32xf32>
    %52 = vector.shape_cast %51 : vector<1x2x32xf32> to vector<2x32xf32>
    %53 = vector.shape_cast %49 : vector<2x32xf32> to vector<1x2x32xf32>
    tpu.vector_store %arg8[%c0_29, %c0_30, %c0_31], %53 {strides = array<i32>} : memref<2x2x32xf32, #tpu.memory_space<vmem>>, vector<1x2x32xf32>,
    %c0_32 = arith.constant 0 : index
    %c0_33 = arith.constant 0 : index
    %54 = vector.load %arg7[%c0_32, %c0_33] : memref<16x32xf32, #tpu.memory_space<vmem>>, vector<16x32xf32>
    %c1 = arith.constant 1 : index
    %c0_34 = arith.constant 0 : index
    %c0_35 = arith.constant 0 : index
    %55 = vector.load %arg4[%c1, %c0_34, %c0_35] : memref<2x32x32xf32, #tpu.memory_space<vmem>>, vector<1x32x32xf32>
    %56 = vector.shape_cast %55 : vector<1x32x32xf32> to vector<32x32xf32>
    %cst_36 = arith.constant dense<0.000000e+00> : vector<16x32xf32>
    %57 = tpu.matmul %54, %56, %cst_36 {dimension_numbers = #tpu.dot_dimension_numbers<[1], [0], [0], [1], [0, 0, 1, 1], [], []>} : vector<16x32xf32>, vector<32x32xf32>, vector<16x32xf32> -> vector<16x32xf32>
    %c1_37 = arith.constant 1 : index
    %c0_38 = arith.constant 0 : index
    %c0_39 = arith.constant 0 : index
    %58 = vector.load %arg6[%c1_37, %c0_38, %c0_39] : memref<2x1x32xf32, #tpu.memory_space<vmem>>, vector<1x1x32xf32>
    %59 = vector.shape_cast %58 : vector<1x1x32xf32> to vector<1x32xf32>
    %60 = vector.broadcast %59 : vector<1x32xf32> to vector<16x32xf32>
    %61 = arith.addf %57, %60 : vector<16x32xf32>
    %c1_40 = arith.constant 1 : index
    %c0_41 = arith.constant 0 : index
    %c0_42 = arith.constant 0 : index
    %62 = vector.load %arg5[%c1_40, %c0_41, %c0_42] : memref<2x32x32xf32, #tpu.memory_space<vmem>>, vector<1x32x32xf32>
    %63 = vector.shape_cast %62 : vector<1x32x32xf32> to vector<32x32xf32>
    %c1_43 = arith.constant 1 : index
    %c0_44 = arith.constant 0 : index
    %c0_45 = arith.constant 0 : index
    %64 = vector.load %arg2[%c1_43, %c0_44, %c0_45] : memref<2x2x32xf32, #tpu.memory_space<vmem>>, vector<1x2x32xf32>
    %65 = vector.shape_cast %64 : vector<1x2x32xf32> to vector<2x32xf32>
    %cst_46 = arith.constant dense<0.000000e+00> : vector<2x32xf32>
    %66 = tpu.matmul %65, %63, %cst_46 {dimension_numbers = #tpu.dot_dimension_numbers<[1], [0], [0], [1], [0, 0, 1, 1], [], []>} : vector<2x32xf32>, vector<32x32xf32>, vector<2x32xf32> -> vector<2x32xf32>
    %67 = vector.extract_strided_slice %61 {offsets = [0, 0], sizes = [2, 32], strides = [1, 1]} : vector<16x32xf32> to vector<2x32xf32>
    %68 = arith.addf %67, %66 : vector<2x32xf32>
    %69 = math.tanh %68 : vector<2x32xf32>
    %c0_47 = arith.constant 0 : index
    %c0_48 = arith.constant 0 : index
    %70 = vector.load %arg7[%c0_47, %c0_48] : memref<16x32xf32, #tpu.memory_space<vmem>>, vector<2x32xf32>
    tpu.vector_store %arg7[%c0_47, %c0_48], %69 {strides = array<i32>} : memref<16x32xf32, #tpu.memory_space<vmem>>, vector<2x32xf32>,
    %cst_49 = arith.constant dense<0.000000e+00> : vector<2x32xf32>
    %71 = tpu.matmul %69, %63, %cst_49 {dimension_numbers = #tpu.dot_dimension_numbers<[1], [0], [0], [1], [0, 0, 1, 1], [], []>} : vector<2x32xf32>, vector<32x32xf32>, vector<2x32xf32> -> vector<2x32xf32>
    %72 = vector.extract_strided_slice %61 {offsets = [2, 0], sizes = [2, 32], strides = [1, 1]} : vector<16x32xf32> to vector<2x32xf32>
    %73 = arith.addf %72, %71 : vector<2x32xf32>
    %74 = math.tanh %73 : vector<2x32xf32>
    %c2_50 = arith.constant 2 : index
    %c0_51 = arith.constant 0 : index
    %75 = vector.load %arg7[%c2_50, %c0_51] : memref<16x32xf32, #tpu.memory_space<vmem>>, vector<2x32xf32>
    tpu.vector_store %arg7[%c2_50, %c0_51], %74 {strides = array<i32>} : memref<16x32xf32, #tpu.memory_space<vmem>>, vector<2x32xf32>,
    %cst_52 = arith.constant dense<0.000000e+00> : vector<2x32xf32>
    %76 = tpu.matmul %74, %63, %cst_52 {dimension_numbers = #tpu.dot_dimension_numbers<[1], [0], [0], [1], [0, 0, 1, 1], [], []>} : vector<2x32xf32>, vector<32x32xf32>, vector<2x32xf32> -> vector<2x32xf32>
    %77 = vector.extract_strided_slice %61 {offsets = [4, 0], sizes = [2, 32], strides = [1, 1]} : vector<16x32xf32> to vector<2x32xf32>
    %78 = arith.addf %77, %76 : vector<2x32xf32>
    %79 = math.tanh %78 : vector<2x32xf32>
    %c4_53 = arith.constant 4 : index
    %c0_54 = arith.constant 0 : index
    %80 = vector.load %arg7[%c4_53, %c0_54] : memref<16x32xf32, #tpu.memory_space<vmem>>, vector<2x32xf32>
    tpu.vector_store %arg7[%c4_53, %c0_54], %79 {strides = array<i32>} : memref<16x32xf32, #tpu.memory_space<vmem>>, vector<2x32xf32>,
    %cst_55 = arith.constant dense<0.000000e+00> : vector<2x32xf32>
    %81 = tpu.matmul %79, %63, %cst_55 {dimension_numbers = #tpu.dot_dimension_numbers<[1], [0], [0], [1], [0, 0, 1, 1], [], []>} : vector<2x32xf32>, vector<32x32xf32>, vector<2x32xf32> -> vector<2x32xf32>
    %82 = vector.extract_strided_slice %61 {offsets = [6, 0], sizes = [2, 32], strides = [1, 1]} : vector<16x32xf32> to vector<2x32xf32>
    %83 = arith.addf %82, %81 : vector<2x32xf32>
    %84 = math.tanh %83 : vector<2x32xf32>
    %c6_56 = arith.constant 6 : index
    %c0_57 = arith.constant 0 : index
    %85 = vector.load %arg7[%c6_56, %c0_57] : memref<16x32xf32, #tpu.memory_space<vmem>>, vector<2x32xf32>
    tpu.vector_store %arg7[%c6_56, %c0_57], %84 {strides = array<i32>} : memref<16x32xf32, #tpu.memory_space<vmem>>, vector<2x32xf32>,
    %cst_58 = arith.constant dense<0.000000e+00> : vector<2x32xf32>
    %86 = tpu.matmul %84, %63, %cst_58 {dimension_numbers = #tpu.dot_dimension_numbers<[1], [0], [0], [1], [0, 0, 1, 1], [], []>} : vector<2x32xf32>, vector<32x32xf32>, vector<2x32xf32> -> vector<2x32xf32>
    %87 = vector.extract_strided_slice %61 {offsets = [8, 0], sizes = [2, 32], strides = [1, 1]} : vector<16x32xf32> to vector<2x32xf32>
    %88 = arith.addf %87, %86 : vector<2x32xf32>
    %89 = math.tanh %88 : vector<2x32xf32>
    %c8_59 = arith.constant 8 : index
    %c0_60 = arith.constant 0 : index
    %90 = vector.load %arg7[%c8_59, %c0_60] : memref<16x32xf32, #tpu.memory_space<vmem>>, vector<2x32xf32>
    tpu.vector_store %arg7[%c8_59, %c0_60], %89 {strides = array<i32>} : memref<16x32xf32, #tpu.memory_space<vmem>>, vector<2x32xf32>,
    %cst_61 = arith.constant dense<0.000000e+00> : vector<2x32xf32>
    %91 = tpu.matmul %89, %63, %cst_61 {dimension_numbers = #tpu.dot_dimension_numbers<[1], [0], [0], [1], [0, 0, 1, 1], [], []>} : vector<2x32xf32>, vector<32x32xf32>, vector<2x32xf32> -> vector<2x32xf32>
    %92 = vector.extract_strided_slice %61 {offsets = [10, 0], sizes = [2, 32], strides = [1, 1]} : vector<16x32xf32> to vector<2x32xf32>
    %93 = arith.addf %92, %91 : vector<2x32xf32>
    %94 = math.tanh %93 : vector<2x32xf32>
    %c10_62 = arith.constant 10 : index
    %c0_63 = arith.constant 0 : index
    %95 = vector.load %arg7[%c10_62, %c0_63] : memref<16x32xf32, #tpu.memory_space<vmem>>, vector<2x32xf32>
    tpu.vector_store %arg7[%c10_62, %c0_63], %94 {strides = array<i32>} : memref<16x32xf32, #tpu.memory_space<vmem>>, vector<2x32xf32>,
    %cst_64 = arith.constant dense<0.000000e+00> : vector<2x32xf32>
    %96 = tpu.matmul %94, %63, %cst_64 {dimension_numbers = #tpu.dot_dimension_numbers<[1], [0], [0], [1], [0, 0, 1, 1], [], []>} : vector<2x32xf32>, vector<32x32xf32>, vector<2x32xf32> -> vector<2x32xf32>
    %97 = vector.extract_strided_slice %61 {offsets = [12, 0], sizes = [2, 32], strides = [1, 1]} : vector<16x32xf32> to vector<2x32xf32>
    %98 = arith.addf %97, %96 : vector<2x32xf32>
    %99 = math.tanh %98 : vector<2x32xf32>
    %c12_65 = arith.constant 12 : index
    %c0_66 = arith.constant 0 : index
    %100 = vector.load %arg7[%c12_65, %c0_66] : memref<16x32xf32, #tpu.memory_space<vmem>>, vector<2x32xf32>
    tpu.vector_store %arg7[%c12_65, %c0_66], %99 {strides = array<i32>} : memref<16x32xf32, #tpu.memory_space<vmem>>, vector<2x32xf32>,
    %cst_67 = arith.constant dense<0.000000e+00> : vector<2x32xf32>
    %101 = tpu.matmul %99, %63, %cst_67 {dimension_numbers = #tpu.dot_dimension_numbers<[1], [0], [0], [1], [0, 0, 1, 1], [], []>} : vector<2x32xf32>, vector<32x32xf32>, vector<2x32xf32> -> vector<2x32xf32>
    %102 = vector.extract_strided_slice %61 {offsets = [14, 0], sizes = [2, 32], strides = [1, 1]} : vector<16x32xf32> to vector<2x32xf32>
    %103 = arith.addf %102, %101 : vector<2x32xf32>
    %104 = math.tanh %103 : vector<2x32xf32>
    %c14_68 = arith.constant 14 : index
    %c0_69 = arith.constant 0 : index
    %105 = vector.load %arg7[%c14_68, %c0_69] : memref<16x32xf32, #tpu.memory_space<vmem>>, vector<2x32xf32>
    tpu.vector_store %arg7[%c14_68, %c0_69], %104 {strides = array<i32>} : memref<16x32xf32, #tpu.memory_space<vmem>>, vector<2x32xf32>,
    %c1_70 = arith.constant 1 : index
    %c0_71 = arith.constant 0 : index
    %c0_72 = arith.constant 0 : index
    %106 = vector.load %arg8[%c1_70, %c0_71, %c0_72] : memref<2x2x32xf32, #tpu.memory_space<vmem>>, vector<1x2x32xf32>
    %107 = vector.shape_cast %106 : vector<1x2x32xf32> to vector<2x32xf32>
    %108 = vector.shape_cast %104 : vector<2x32xf32> to vector<1x2x32xf32>
    tpu.vector_store %arg8[%c1_70, %c0_71, %c0_72], %108 {strides = array<i32>} : memref<2x2x32xf32, #tpu.memory_space<vmem>>, vector<1x2x32xf32>,
    return
  }
  func.func @transform_0(%arg0: i32) -> (i32, i32) {
    %c0_i32 = arith.constant 0 : i32
    %c0_i32_0 = arith.constant 0 : i32
    %c0_i32_1 = arith.constant 0 : i32
    return %c0_i32, %c0_i32_0 : i32, i32
  }
  func.func @transform_1(%arg0: i32) -> (i32, i32, i32) {
    %c0_i32 = arith.constant 0 : i32
    %c0_i32_0 = arith.constant 0 : i32
    %c0_i32_1 = arith.constant 0 : i32
    %c0_i32_2 = arith.constant 0 : i32
    return %c0_i32, %c0_i32_0, %c0_i32_1 : i32, i32, i32
  }
  func.func @transform_2(%arg0: i32) -> (i32, i32) {
    %c0_i32 = arith.constant 0 : i32
    %c0_i32_0 = arith.constant 0 : i32
    %c0_i32_1 = arith.constant 0 : i32
    return %c0_i32, %c0_i32_0 : i32, i32
  }
  func.func @transform_3(%arg0: i32) -> (i32, i32, i32) {
    %c0_i32 = arith.constant 0 : i32
    %c0_i32_0 = arith.constant 0 : i32
    %c0_i32_1 = arith.constant 0 : i32
    %c0_i32_2 = arith.constant 0 : i32
    return %c0_i32, %c0_i32_0, %c0_i32_1 : i32, i32, i32
  }
  func.func @transform_4(%arg0: i32) -> (i32, i32, i32) {
    %c0_i32 = arith.constant 0 : i32
    %c0_i32_0 = arith.constant 0 : i32
    %c0_i32_1 = arith.constant 0 : i32
    %c0_i32_2 = arith.constant 0 : i32
    return %c0_i32, %c0_i32_0, %c0_i32_1 : i32, i32, i32
  }
  func.func @transform_5(%arg0: i32) -> (i32, i32, i32) {
    %c0_i32 = arith.constant 0 : i32
    %c0_i32_0 = arith.constant 0 : i32
    %c0_i32_1 = arith.constant 0 : i32
    %c0_i32_2 = arith.constant 0 : i32
    return %c0_i32, %c0_i32_0, %c0_i32_1 : i32, i32, i32
  }
  func.func @transform_6(%arg0: i32) -> (i32, i32) {
    %c0_i32 = arith.constant 0 : i32
    %c0_i32_0 = arith.constant 0 : i32
    %c0_i32_1 = arith.constant 0 : i32
    return %c0_i32, %c0_i32_0 : i32, i32
  }
  func.func @transform_7(%arg0: i32) -> (i32, i32, i32) {
    %c0_i32 = arith.constant 0 : i32
    %c0_i32_0 = arith.constant 0 : i32
    %c0_i32_1 = arith.constant 0 : i32
    %c0_i32_2 = arith.constant 0 : i32
    return %c0_i32, %c0_i32_0, %c0_i32_1 : i32, i32, i32
  }
}

</mosaic_0001>

<llo_original>
// kernel: tpu_custom_call.1
$region0: #{tpu_custom_call.1}
  #allocation0 [shape = 'u32[]', space=smem, size = 0x4, offset = 0x4, fixed_abs, tag = 'smem constant byte address 0x4 - core index']
  #allocation1 [shape = 'u32[144,128]{1,0:T(1,128)}', space=vmem, size = 0x12000, scoped, tag = 'internal scratch']
  %s0 = inlined_call_operand.hbm [shape: f32[16,16], index: 0, kind: input, shape index: {}]
  %s1 = inlined_call_operand.hbm [shape: f32[2,2,32], index: 1, kind: input, shape index: {}]
  %s2 = inlined_call_operand.hbm [shape: f32[16,32], index: 2, kind: input, shape index: {}]
  %s3 = inlined_call_operand.hbm [shape: f32[2,32,32], index: 3, kind: input, shape index: {}]
  %s4 = inlined_call_operand.hbm [shape: f32[2,32,32], index: 4, kind: input, shape index: {}]
  %s5 = inlined_call_operand.vmem [shape: f32[2,1,32], index: 5, kind: input, shape index: {}]
  %s6 = inlined_call_operand.hbm [shape: f32[16,32], index: 6, kind: output, shape index: {0}]
  %s7 = inlined_call_operand.hbm [shape: f32[2,2,32], index: 7, kind: output, shape index: {1}]
  %8 = xla_tuple %s6, %s7
  %s9 = sld [smem:[#allocation0]]
  $region62: #{tpu_custom_call.1} parent=0
    _
  %s11 = ssub.s32 1, %s9
  %s12 = scalar_select 0, %s11, %s9
  $region1: #{tpu_custom_call.1} parent=0
    #allocation2 [shape = 'u8[8192]{0}', space=vmem, size = 0x2000, scoped, tag = 'input window, operand 0, single buffered']
    #allocation3 [shape = 's32[1]{0}', space=sflag, size = 0x4, scoped, tag = 'scoped memory for tpu_custom_call.1']
    #allocation4 [shape = 's32[1]{0}', space=sflag, size = 0x4, scoped, tag = 'scoped memory for tpu_custom_call.1']
    #allocation5 [shape = 'u8[2048]{0}', space=vmem, size = 0x800, scoped, tag = 'input window, operand 1, single buffered']
    #allocation6 [shape = 's32[1]{0}', space=sflag, size = 0x4, scoped, tag = 'scoped memory for tpu_custom_call.1']
    #allocation7 [shape = 'u8[8192]{0}', space=vmem, size = 0x2000, scoped, tag = 'input window, operand 2, single buffered']
    #allocation8 [shape = 'u8[32768]{0}', space=vmem, size = 0x8000, scoped, tag = 'input window, operand 3, single buffered']
    #allocation9 [shape = 's32[1]{0}', space=sflag, size = 0x4, scoped, tag = 'scoped memory for tpu_custom_call.1']
    #allocation10 [shape = 'u8[32768]{0}', space=vmem, size = 0x8000, scoped, tag = 'input window, operand 4, single buffered']
    #allocation11 [shape = 'u8[8192]{0}', space=vmem, size = 0x2000, scoped, tag = 'output window, operand 0, single buffered']
    #allocation12 [shape = 'u8[2048]{0}', space=vmem, size = 0x800, scoped, tag = 'output window, operand 1, single buffered']
    #allocation13 [shape = 's32[1]{0}', space=sflag, size = 0x4, scoped, tag = 'scoped memory for tpu_custom_call.1']
    %13 = vsyncpa [#allocation3], 0
    %14 = vsyncpa [#allocation6], 0
    %15 = vsyncpa [#allocation9], 0
    %16 = vsyncpa [#allocation4], 0
    %17 = vsyncpa [#allocation13], 0
    // Predicated region
    $region2: #{tpu_custom_call.1} parent=1 // pred_check
      _
    $region3: #{tpu_custom_call.1} parent=1 // pred_check_branch
      %19 = sbr.rel (0) target = $region5
    $region4: #{tpu_custom_call.1} parent=1 // pred_region
      %s21 = ssub.s32 256, 256
      %22 = vsyncadd [#allocation3], %s21
      %s23 = sshll.u32 [#allocation2], 4
      %s24 = int_to_ptr.vmem [resolvable:$true] %s23
      %29 = dma.hbm_to_vmem [thread:$0]  %s0, 256, %s24, [#allocation3], 128, 128, 8
    $region5: #{tpu_custom_call.1} parent=1 // pred_fallthru
      _
    // Predicated region
    $region6: #{tpu_custom_call.1} parent=1 // pred_check
      _
    $region7: #{tpu_custom_call.1} parent=1 // pred_check_branch
      %31 = sbr.rel (0) target = $region9
    $region8: #{tpu_custom_call.1} parent=1 // pred_region
      %s33 = ssub.s32 64, 64
      %34 = vsyncadd [#allocation6], %s33
      %s35 = sshll.u32 [#allocation5], 4
      %s36 = int_to_ptr.vmem [resolvable:$true] %s35
      %41 = dma.hbm_to_vmem [thread:$0]  %s1, 64, %s36, [#allocation6], 32, 32, 2
    $region9: #{tpu_custom_call.1} parent=1 // pred_fallthru
      _
    // Predicated region
    $region10: #{tpu_custom_call.1} parent=1 // pred_check
      _
    $region11: #{tpu_custom_call.1} parent=1 // pred_check_branch
      %43 = sbr.rel (0) target = $region13
    $region12: #{tpu_custom_call.1} parent=1 // pred_region
      %s45 = ssub.s32 256, 256
      %46 = vsyncadd [#allocation6], %s45
      %s47 = sshll.u32 [#allocation7], 4
      %s48 = int_to_ptr.vmem [resolvable:$true] %s47
      %53 = dma.hbm_to_vmem [thread:$0]  %s2, 256, %s48, [#allocation6], 128, 128, 8
    $region13: #{tpu_custom_call.1} parent=1 // pred_fallthru
      _
    // Predicated region
    $region14: #{tpu_custom_call.1} parent=1 // pred_check
      _
    $region15: #{tpu_custom_call.1} parent=1 // pred_check_branch
      %55 = sbr.rel (0) target = $region17
    $region16: #{tpu_custom_call.1} parent=1 // pred_region
      %s57 = ssub.s32 1024, 1024
      %58 = vsyncadd [#allocation9], %s57
      %s59 = sshll.u32 [#allocation8], 4
      %s60 = int_to_ptr.vmem [resolvable:$true] %s59
      %65 = dma.hbm_to_vmem [thread:$0]  %s3, 1024, %s60, [#allocation9], 128, 128, 8
    $region17: #{tpu_custom_call.1} parent=1 // pred_fallthru
      _
    // Predicated region
    $region18: #{tpu_custom_call.1} parent=1 // pred_check
      _
    $region19: #{tpu_custom_call.1} parent=1 // pred_check_branch
      %67 = sbr.rel (0) target = $region21
    $region20: #{tpu_custom_call.1} parent=1 // pred_region
      %s69 = ssub.s32 1024, 1024
      %70 = vsyncadd [#allocation9], %s69
      %s71 = sshll.u32 [#allocation10], 4
      %s72 = int_to_ptr.vmem [resolvable:$true] %s71
      %77 = dma.hbm_to_vmem [thread:$0]  %s4, 1024, %s72, [#allocation9], 128, 128, 8
    $region21: #{tpu_custom_call.1} parent=1 // pred_fallthru
      _
    // Predicated region
    $region22: #{tpu_custom_call.1} parent=1 // pred_check
      _
    $region23: #{tpu_custom_call.1} parent=1 // pred_check_branch
      %79 = sbr.rel (0) target = $region25
    $region24: #{tpu_custom_call.1} parent=1 // pred_region
      _
    $region25: #{tpu_custom_call.1} parent=1 // pred_fallthru
      _
    // Predicated region
    $region26: #{tpu_custom_call.1} parent=1 // pred_check
      _
    $region27: #{tpu_custom_call.1} parent=1 // pred_check_branch
      %81 = sbr.rel (0) target = $region29
    $region28: #{tpu_custom_call.1} parent=1 // pred_region
      %82 = dma.done [#allocation3], 256
    $region29: #{tpu_custom_call.1} parent=1 // pred_fallthru
      _
    // Predicated region
    $region30: #{tpu_custom_call.1} parent=1 // pred_check
      _
    $region31: #{tpu_custom_call.1} parent=1 // pred_check_branch
      %84 = sbr.rel (0) target = $region33
    $region32: #{tpu_custom_call.1} parent=1 // pred_region
      %85 = dma.done [#allocation6], 64
    $region33: #{tpu_custom_call.1} parent=1 // pred_fallthru
      _
    // Predicated region
    $region34: #{tpu_custom_call.1} parent=1 // pred_check
      _
    $region35: #{tpu_custom_call.1} parent=1 // pred_check_branch
      %87 = sbr.rel (0) target = $region37
    $region36: #{tpu_custom_call.1} parent=1 // pred_region
      %88 = dma.done [#allocation6], 256
    $region37: #{tpu_custom_call.1} parent=1 // pred_fallthru
      _
    // Predicated region
    $region38: #{tpu_custom_call.1} parent=1 // pred_check
      _
    $region39: #{tpu_custom_call.1} parent=1 // pred_check_branch
      %90 = sbr.rel (0) target = $region41
    $region40: #{tpu_custom_call.1} parent=1 // pred_region
      %91 = dma.done [#allocation9], 1024
    $region41: #{tpu_custom_call.1} parent=1 // pred_fallthru
      _
    // Predicated region
    $region42: #{tpu_custom_call.1} parent=1 // pred_check
      _
    $region43: #{tpu_custom_call.1} parent=1 // pred_check_branch
      %93 = sbr.rel (0) target = $region45
    $region44: #{tpu_custom_call.1} parent=1 // pred_region
      %94 = dma.done [#allocation9], 1024
    $region45: #{tpu_custom_call.1} parent=1 // pred_fallthru
      _
    %v95 = vld [vmem:[#allocation2] sm:$0xff]
    %v96 = vld [vmem:[#allocation2 + $0x8] sm:$0xff]
    %v97 = vld [vmem:[#allocation7] sm:$0xff]
    %v98 = vld [vmem:[#allocation7 + $0x8] sm:$0xff]
    %v99 = vld [vmem:[%s5] sm:$0x1]
    %v101 = vlaneseq
    %v102 = vshrl.u32 %v101, 7
    %v103 = vsub.s32 0, %v102
    %v104 = vrot.slane %v99, %v103
    %vm106 = vcmask 130048
    %v108 = vsel %vm106, %v95, 0
    %v111 = vsel %vm106, %v96, 0
    %113 = vmatprep.subr.mxu0 0.0
    %114 = vmatpush1.msra.mxu0 %v97
    %115 = vmatprep.subr.mxu0 0.0
    %116 = vmatpush1.msra.mxu0 %v98
    %117 = vmatprep.subr.mxu0 0.0
    %118 = vmatpush1.msra.mxu0 0.0
    %119 = vmatprep.subr.mxu0 0.0
    %120 = vmatpush1.msra.mxu0 0.0
    %121 = vmatprep.subr.mxu0 0.0
    %122 = vmatpush1.msra.mxu0 0.0
    %123 = vmatprep.subr.mxu0 0.0
    %124 = vmatpush1.msra.mxu0 0.0
    %125 = vmatprep.subr.mxu0 0.0
    %126 = vmatpush1.msra.mxu0 0.0
    %127 = vmatprep.subr.mxu0 0.0
    %128 = vmatpush1.msra.mxu0 0.0
    %129 = vmatprep.subr.mxu0 0.0
    %130 = vmatpush1.msra.mxu0 0.0
    %131 = vmatprep.subr.mxu0 0.0
    %132 = vmatpush1.msra.mxu0 0.0
    %133 = vmatprep.subr.mxu0 0.0
    %134 = vmatpush1.msra.mxu0 0.0
    %135 = vmatprep.subr.mxu0 0.0
    %136 = vmatpush1.msra.mxu0 0.0
    %137 = vmatprep.subr.mxu0 0.0
    %138 = vmatpush1.msra.mxu0 0.0
    %139 = vmatprep.subr.mxu0 0.0
    %140 = vmatpush1.msra.mxu0 0.0
    %141 = vmatprep.subr.mxu0 0.0
    %142 = vmatpush1.msra.mxu0 0.0
    %143 = vmatprep.subr.mxu0 0.0
    %144 = vmatpush1.msra.mxu0 0.0
    %145 = vmatprep.subr.mxu0 0.0
    %146 = vmatpush1.msra.mxu0 0.0
    %147 = vmatprep.subr.mxu0 0.0
    %148 = vmatpush1.msra.mxu0 0.0
    %149 = vmatprep.subr.mxu0 0.0
    %150 = vmatpush1.msra.mxu0 0.0
    %151 = vmatprep.subr.mxu0 0.0
    %152 = vmatpush1.msra.mxu0 0.0
    %153 = vmatprep.subr.mxu0 0.0
    %154 = vmatpush1.msra.mxu0 0.0
    %155 = vmatprep.subr.mxu0 0.0
    %156 = vmatpush1.msra.mxu0 0.0
    %157 = vmatprep.subr.mxu0 0.0
    %158 = vmatpush1.msra.mxu0 0.0
    %159 = vmatprep.subr.mxu0 0.0
    %160 = vmatpush1.msra.mxu0 0.0
    %161 = vmatprep.subr.mxu0 0.0
    %162 = vmatpush1.msra.mxu0 0.0
    %163 = vmatprep.subr.mxu0 0.0
    %164 = vmatpush1.msra.mxu0 0.0
    %165 = vmatprep.subr.mxu0 0.0
    %166 = vmatpush1.msra.mxu0 0.0
    %167 = vmatprep.subr.mxu0 0.0
    %168 = vmatpush1.msra.mxu0 0.0
    %169 = vmatprep.subr.mxu0 0.0
    %170 = vmatpush1.msra.mxu0 0.0
    %171 = vmatprep.subr.mxu0 0.0
    %172 = vmatpush1.msra.mxu0 0.0
    %173 = vmatprep.subr.mxu0 0.0
    %174 = vmatpush1.msra.mxu0 0.0
    %175 = vmatprep.subr.mxu0 0.0
    %176 = vmatpush1.msra.mxu0 0.0
    %177 = vmatprep.mubr.f32.mxu0 0.0
    %178 = vmatmul.mubr.f32.gmra.mrb[0].mxu0 %v108
    %v179 = vpop.f32.mrb[0].mxu0
    %v180 = vadd.f32 %v104, %v179
    %v181 = vpop.f32.mrb[0].mxu0
    %182 = vmatprep.mubr.f32.mxu0 0.0
    %183 = vmatmul.mubr.f32.gmra.mrb[0].mxu0 %v111
    %v184 = vpop.f32.mrb[0].mxu0
    %v185 = vadd.f32 %v104, %v184
    %v186 = vpop.f32.mrb[0].mxu0
    %187 = vdwg.mxu0
    %v188 = vld [vmem:[#allocation10] sm:$0xff]
    %v189 = vld [vmem:[#allocation10 + $0x8] sm:$0xff]
    %v190 = vld [vmem:[#allocation10 + $0x10] sm:$0xff]
    %v191 = vld [vmem:[#allocation10 + $0x18] sm:$0xff]
    %v192 = vld [vmem:[#allocation5] sm:$0x3]
    %vm193 = vcmask 261120
    %v195 = vsel %vm193, %v192, 0
    %197 = vmatprep.subr.mxu0 0.0
    %198 = vmatpush1.msra.mxu0 %v188
    %199 = vmatprep.subr.mxu0 0.0
    %200 = vmatpush1.msra.mxu0 %v189
    %201 = vmatprep.subr.mxu0 0.0
    %202 = vmatpush1.msra.mxu0 %v190
    %203 = vmatprep.subr.mxu0 0.0
    %204 = vmatpush1.msra.mxu0 %v191
    %205 = vmatprep.subr.mxu0 0.0
    %206 = vmatpush1.msra.mxu0 0.0
    %207 = vmatprep.subr.mxu0 0.0
    %208 = vmatpush1.msra.mxu0 0.0
    %209 = vmatprep.subr.mxu0 0.0
    %210 = vmatpush1.msra.mxu0 0.0
    %211 = vmatprep.subr.mxu0 0.0
    %212 = vmatpush1.msra.mxu0 0.0
    %213 = vmatprep.subr.mxu0 0.0
    %214 = vmatpush1.msra.mxu0 0.0
    %215 = vmatprep.subr.mxu0 0.0
    %216 = vmatpush1.msra.mxu0 0.0
    %217 = vmatprep.subr.mxu0 0.0
    %218 = vmatpush1.msra.mxu0 0.0
    %219 = vmatprep.subr.mxu0 0.0
    %220 = vmatpush1.msra.mxu0 0.0
    %221 = vmatprep.subr.mxu0 0.0
    %222 = vmatpush1.msra.mxu0 0.0
    %223 = vmatprep.subr.mxu0 0.0
    %224 = vmatpush1.msra.mxu0 0.0
    %225 = vmatprep.subr.mxu0 0.0
    %226 = vmatpush1.msra.mxu0 0.0
    %227 = vmatprep.subr.mxu0 0.0
    %228 = vmatpush1.msra.mxu0 0.0
    %229 = vmatprep.subr.mxu0 0.0
    %230 = vmatpush1.msra.mxu0 0.0
    %231 = vmatprep.subr.mxu0 0.0
    %232 = vmatpush1.msra.mxu0 0.0
    %233 = vmatprep.subr.mxu0 0.0
    %234 = vmatpush1.msra.mxu0 0.0
    %235 = vmatprep.subr.mxu0 0.0
    %236 = vmatpush1.msra.mxu0 0.0
    %237 = vmatprep.subr.mxu0 0.0
    %238 = vmatpush1.msra.mxu0 0.0
    %239 = vmatprep.subr.mxu0 0.0
    %240 = vmatpush1.msra.mxu0 0.0
    %241 = vmatprep.subr.mxu0 0.0
    %242 = vmatpush1.msra.mxu0 0.0
    %243 = vmatprep.subr.mxu0 0.0
    %244 = vmatpush1.msra.mxu0 0.0
    %245 = vmatprep.subr.mxu0 0.0
    %246 = vmatpush1.msra.mxu0 0.0
    %247 = vmatprep.subr.mxu0 0.0
    %248 = vmatpush1.msra.mxu0 0.0
    %249 = vmatprep.subr.mxu0 0.0
    %250 = vmatpush1.msra.mxu0 0.0
    %251 = vmatprep.subr.mxu0 0.0
    %252 = vmatpush1.msra.mxu0 0.0
    %253 = vmatprep.subr.mxu0 0.0
    %254 = vmatpush1.msra.mxu0 0.0
    %255 = vmatprep.subr.mxu0 0.0
    %256 = vmatpush1.msra.mxu0 0.0
    %257 = vmatprep.subr.mxu0 0.0
    %258 = vmatpush1.msra.mxu0 0.0
    %259 = vmatprep.subr.mxu0 0.0
    %260 = vmatpush1.msra.mxu0 0.0
    %261 = vmatprep.mubr.f32.mxu0 0.0
    %262 = vmatmul.mubr.f32.gmra.mrb[0].mxu0 %v195
    %v263 = vpop.f32.mrb[0].mxu0
    %v264 = vadd.f32 0.0, %v263
    %v265 = vpop.f32.mrb[0].mxu0
    %266 = vdwg.mxu0
    %v267 = vadd.f32 %v180, %v264
    %v268 = vtanh.pop %v267
    %vm269 = vcmask 254976
    %270 = vst.msk [vmem:[#allocation11] sm:$0x3] %vm269, %v268
    %v272 = vsel %vm193, %v268, 0
    %274 = vmatprep.subr.mxu0 0.0
    %275 = vmatpush1.msra.mxu0 %v188
    %276 = vmatprep.subr.mxu0 0.0
    %277 = vmatpush1.msra.mxu0 %v189
    %278 = vmatprep.subr.mxu0 0.0
    %279 = vmatpush1.msra.mxu0 %v190
    %280 = vmatprep.subr.mxu0 0.0
    %281 = vmatpush1.msra.mxu0 %v191
    %282 = vmatprep.subr.mxu0 0.0
    %283 = vmatpush1.msra.mxu0 0.0
    %284 = vmatprep.subr.mxu0 0.0
    %285 = vmatpush1.msra.mxu0 0.0
    %286 = vmatprep.subr.mxu0 0.0
    %287 = vmatpush1.msra.mxu0 0.0
    %288 = vmatprep.subr.mxu0 0.0
    %289 = vmatpush1.msra.mxu0 0.0
    %290 = vmatprep.subr.mxu0 0.0
    %291 = vmatpush1.msra.mxu0 0.0
    %292 = vmatprep.subr.mxu0 0.0
    %293 = vmatpush1.msra.mxu0 0.0
    %294 = vmatprep.subr.mxu0 0.0
    %295 = vmatpush1.msra.mxu0 0.0
    %296 = vmatprep.subr.mxu0 0.0
    %297 = vmatpush1.msra.mxu0 0.0
    %298 = vmatprep.subr.mxu0 0.0
    %299 = vmatpush1.msra.mxu0 0.0
    %300 = vmatprep.subr.mxu0 0.0
    %301 = vmatpush1.msra.mxu0 0.0
    %302 = vmatprep.subr.mxu0 0.0
    %303 = vmatpush1.msra.mxu0 0.0
    %304 = vmatprep.subr.mxu0 0.0
    %305 = vmatpush1.msra.mxu0 0.0
    %306 = vmatprep.subr.mxu0 0.0
    %307 = vmatpush1.msra.mxu0 0.0
    %308 = vmatprep.subr.mxu0 0.0
    %309 = vmatpush1.msra.mxu0 0.0
    %310 = vmatprep.subr.mxu0 0.0
    %311 = vmatpush1.msra.mxu0 0.0
    %312 = vmatprep.subr.mxu0 0.0
    %313 = vmatpush1.msra.mxu0 0.0
    %314 = vmatprep.subr.mxu0 0.0
    %315 = vmatpush1.msra.mxu0 0.0
    %316 = vmatprep.subr.mxu0 0.0
    %317 = vmatpush1.msra.mxu0 0.0
    %318 = vmatprep.subr.mxu0 0.0
    %319 = vmatpush1.msra.mxu0 0.0
    %320 = vmatprep.subr.mxu0 0.0
    %321 = vmatpush1.msra.mxu0 0.0
    %322 = vmatprep.subr.mxu0 0.0
    %323 = vmatpush1.msra.mxu0 0.0
    %324 = vmatprep.subr.mxu0 0.0
    %325 = vmatpush1.msra.mxu0 0.0
    %326 = vmatprep.subr.mxu0 0.0
    %327 = vmatpush1.msra.mxu0 0.0
    %328 = vmatprep.subr.mxu0 0.0
    %329 = vmatpush1.msra.mxu0 0.0
    %330 = vmatprep.subr.mxu0 0.0
    %331 = vmatpush1.msra.mxu0 0.0
    %332 = vmatprep.subr.mxu0 0.0
    %333 = vmatpush1.msra.mxu0 0.0
    %334 = vmatprep.subr.mxu0 0.0
    %335 = vmatpush1.msra.mxu0 0.0
    %336 = vmatprep.subr.mxu0 0.0
    %337 = vmatpush1.msra.mxu0 0.0
    %338 = vmatprep.mubr.f32.mxu0 0.0
    %339 = vmatmul.mubr.f32.gmra.mrb[0].mxu0 %v272
    %v340 = vpop.f32.mrb[0].mxu0
    %v341 = vadd.f32 0.0, %v340
    %v342 = vpop.f32.mrb[0].mxu0
    %343 = vdwg.mxu0
    %v345 = vrot.slane %v341, 6
    %v347 = vadd.f32 %v180, %v345
    %v348 = vtanh.pop %v347
    %vm349 = vcmask 257026
    %350 = vst.msk [vmem:[#allocation11] sm:$0xc] %vm349, %v348
    %v352 = vrot.slane %v348, 2
    %v353 = vsel %vm193, %v352, 0
    %355 = vmatprep.subr.mxu0 0.0
    %356 = vmatpush1.msra.mxu0 %v188
    %357 = vmatprep.subr.mxu0 0.0
    %358 = vmatpush1.msra.mxu0 %v189
    %359 = vmatprep.subr.mxu0 0.0
    %360 = vmatpush1.msra.mxu0 %v190
    %361 = vmatprep.subr.mxu0 0.0
    %362 = vmatpush1.msra.mxu0 %v191
    %363 = vmatprep.subr.mxu0 0.0
    %364 = vmatpush1.msra.mxu0 0.0
    %365 = vmatprep.subr.mxu0 0.0
    %366 = vmatpush1.msra.mxu0 0.0
    %367 = vmatprep.subr.mxu0 0.0
    %368 = vmatpush1.msra.mxu0 0.0
    %369 = vmatprep.subr.mxu0 0.0
    %370 = vmatpush1.msra.mxu0 0.0
    %371 = vmatprep.subr.mxu0 0.0
    %372 = vmatpush1.msra.mxu0 0.0
    %373 = vmatprep.subr.mxu0 0.0
    %374 = vmatpush1.msra.mxu0 0.0
    %375 = vmatprep.subr.mxu0 0.0
    %376 = vmatpush1.msra.mxu0 0.0
    %377 = vmatprep.subr.mxu0 0.0
    %378 = vmatpush1.msra.mxu0 0.0
    %379 = vmatprep.subr.mxu0 0.0
    %380 = vmatpush1.msra.mxu0 0.0
    %381 = vmatprep.subr.mxu0 0.0
    %382 = vmatpush1.msra.mxu0 0.0
    %383 = vmatprep.subr.mxu0 0.0
    %384 = vmatpush1.msra.mxu0 0.0
    %385 = vmatprep.subr.mxu0 0.0
    %386 = vmatpush1.msra.mxu0 0.0
    %387 = vmatprep.subr.mxu0 0.0
    %388 = vmatpush1.msra.mxu0 0.0
    %389 = vmatprep.subr.mxu0 0.0
    %390 = vmatpush1.msra.mxu0 0.0
    %391 = vmatprep.subr.mxu0 0.0
    %392 = vmatpush1.msra.mxu0 0.0
    %393 = vmatprep.subr.mxu0 0.0
    %394 = vmatpush1.msra.mxu0 0.0
    %395 = vmatprep.subr.mxu0 0.0
    %396 = vmatpush1.msra.mxu0 0.0
    %397 = vmatprep.subr.mxu0 0.0
    %398 = vmatpush1.msra.mxu0 0.0
    %399 = vmatprep.subr.mxu0 0.0
    %400 = vmatpush1.msra.mxu0 0.0
    %401 = vmatprep.subr.mxu0 0.0
    %402 = vmatpush1.msra.mxu0 0.0
    %403 = vmatprep.subr.mxu0 0.0
    %404 = vmatpush1.msra.mxu0 0.0
    %405 = vmatprep.subr.mxu0 0.0
    %406 = vmatpush1.msra.mxu0 0.0
    %407 = vmatprep.subr.mxu0 0.0
    %408 = vmatpush1.msra.mxu0 0.0
    %409 = vmatprep.subr.mxu0 0.0
    %410 = vmatpush1.msra.mxu0 0.0
    %411 = vmatprep.subr.mxu0 0.0
    %412 = vmatpush1.msra.mxu0 0.0
    %413 = vmatprep.subr.mxu0 0.0
    %414 = vmatpush1.msra.mxu0 0.0
    %415 = vmatprep.subr.mxu0 0.0
    %416 = vmatpush1.msra.mxu0 0.0
    %417 = vmatprep.subr.mxu0 0.0
    %418 = vmatpush1.msra.mxu0 0.0
    %419 = vmatprep.mubr.f32.mxu0 0.0
    %420 = vmatmul.mubr.f32.gmra.mrb[0].mxu0 %v353
    %v421 = vpop.f32.mrb[0].mxu0
    %v422 = vadd.f32 0.0, %v421
    %v423 = vpop.f32.mrb[0].mxu0
    %424 = vdwg.mxu0
    %v426 = vrot.slane %v422, 4
    %v428 = vadd.f32 %v180, %v426
    %v429 = vtanh.pop %v428
    %vm430 = vcmask 259076
    %431 = vst.msk [vmem:[#allocation11] sm:$0x30] %vm430, %v429
    %v433 = vrot.slane %v429, 4
    %v434 = vsel %vm193, %v433, 0
    %436 = vmatprep.subr.mxu0 0.0
    %437 = vmatpush1.msra.mxu0 %v188
    %438 = vmatprep.subr.mxu0 0.0
    %439 = vmatpush1.msra.mxu0 %v189
    %440 = vmatprep.subr.mxu0 0.0
    %441 = vmatpush1.msra.mxu0 %v190
    %442 = vmatprep.subr.mxu0 0.0
    %443 = vmatpush1.msra.mxu0 %v191
    %444 = vmatprep.subr.mxu0 0.0
    %445 = vmatpush1.msra.mxu0 0.0
    %446 = vmatprep.subr.mxu0 0.0
    %447 = vmatpush1.msra.mxu0 0.0
    %448 = vmatprep.subr.mxu0 0.0
    %449 = vmatpush1.msra.mxu0 0.0
    %450 = vmatprep.subr.mxu0 0.0
    %451 = vmatpush1.msra.mxu0 0.0
    %452 = vmatprep.subr.mxu0 0.0
    %453 = vmatpush1.msra.mxu0 0.0
    %454 = vmatprep.subr.mxu0 0.0
    %455 = vmatpush1.msra.mxu0 0.0
    %456 = vmatprep.subr.mxu0 0.0
    %457 = vmatpush1.msra.mxu0 0.0
    %458 = vmatprep.subr.mxu0 0.0
    %459 = vmatpush1.msra.mxu0 0.0
    %460 = vmatprep.subr.mxu0 0.0
    %461 = vmatpush1.msra.mxu0 0.0
    %462 = vmatprep.subr.mxu0 0.0
    %463 = vmatpush1.msra.mxu0 0.0
    %464 = vmatprep.subr.mxu0 0.0
    %465 = vmatpush1.msra.mxu0 0.0
    %466 = vmatprep.subr.mxu0 0.0
    %467 = vmatpush1.msra.mxu0 0.0
    %468 = vmatprep.subr.mxu0 0.0
    %469 = vmatpush1.msra.mxu0 0.0
    %470 = vmatprep.subr.mxu0 0.0
    %471 = vmatpush1.msra.mxu0 0.0
    %472 = vmatprep.subr.mxu0 0.0
    %473 = vmatpush1.msra.mxu0 0.0
    %474 = vmatprep.subr.mxu0 0.0
    %475 = vmatpush1.msra.mxu0 0.0
    %476 = vmatprep.subr.mxu0 0.0
    %477 = vmatpush1.msra.mxu0 0.0
    %478 = vmatprep.subr.mxu0 0.0
    %479 = vmatpush1.msra.mxu0 0.0
    %480 = vmatprep.subr.mxu0 0.0
    %481 = vmatpush1.msra.mxu0 0.0
    %482 = vmatprep.subr.mxu0 0.0
    %483 = vmatpush1.msra.mxu0 0.0
    %484 = vmatprep.subr.mxu0 0.0
    %485 = vmatpush1.msra.mxu0 0.0
    %486 = vmatprep.subr.mxu0 0.0
    %487 = vmatpush1.msra.mxu0 0.0
    %488 = vmatprep.subr.mxu0 0.0
    %489 = vmatpush1.msra.mxu0 0.0
    %490 = vmatprep.subr.mxu0 0.0
    %491 = vmatpush1.msra.mxu0 0.0
    %492 = vmatprep.subr.mxu0 0.0
    %493 = vmatpush1.msra.mxu0 0.0
    %494 = vmatprep.subr.mxu0 0.0
    %495 = vmatpush1.msra.mxu0 0.0
    %496 = vmatprep.subr.mxu0 0.0
    %497 = vmatpush1.msra.mxu0 0.0
    %498 = vmatprep.subr.mxu0 0.0
    %499 = vmatpush1.msra.mxu0 0.0
    %500 = vmatprep.mubr.f32.mxu0 0.0
    %501 = vmatmul.mubr.f32.gmra.mrb[0].mxu0 %v434
    %v502 = vpop.f32.mrb[0].mxu0
    %v503 = vadd.f32 0.0, %v502
    %v504 = vpop.f32.mrb[0].mxu0
    %505 = vdwg.mxu0
    %v507 = vrot.slane %v503, 2
    %v509 = vadd.f32 %v180, %v507
    %v510 = vtanh.pop %v509
    %vm511 = vcmask 261126
    %512 = vst.msk [vmem:[#allocation11] sm:$0xc0] %vm511, %v510
    %v514 = vrot.slane %v510, 6
    %v515 = vsel %vm193, %v514, 0
    %517 = vmatprep.subr.mxu0 0.0
    %518 = vmatpush1.msra.mxu0 %v188
    %519 = vmatprep.subr.mxu0 0.0
    %520 = vmatpush1.msra.mxu0 %v189
    %521 = vmatprep.subr.mxu0 0.0
    %522 = vmatpush1.msra.mxu0 %v190
    %523 = vmatprep.subr.mxu0 0.0
    %524 = vmatpush1.msra.mxu0 %v191
    %525 = vmatprep.subr.mxu0 0.0
    %526 = vmatpush1.msra.mxu0 0.0
    %527 = vmatprep.subr.mxu0 0.0
    %528 = vmatpush1.msra.mxu0 0.0
    %529 = vmatprep.subr.mxu0 0.0
    %530 = vmatpush1.msra.mxu0 0.0
    %531 = vmatprep.subr.mxu0 0.0
    %532 = vmatpush1.msra.mxu0 0.0
    %533 = vmatprep.subr.mxu0 0.0
    %534 = vmatpush1.msra.mxu0 0.0
    %535 = vmatprep.subr.mxu0 0.0
    %536 = vmatpush1.msra.mxu0 0.0
    %537 = vmatprep.subr.mxu0 0.0
    %538 = vmatpush1.msra.mxu0 0.0
    %539 = vmatprep.subr.mxu0 0.0
    %540 = vmatpush1.msra.mxu0 0.0
    %541 = vmatprep.subr.mxu0 0.0
    %542 = vmatpush1.msra.mxu0 0.0
    %543 = vmatprep.subr.mxu0 0.0
    %544 = vmatpush1.msra.mxu0 0.0
    %545 = vmatprep.subr.mxu0 0.0
    %546 = vmatpush1.msra.mxu0 0.0
    %547 = vmatprep.subr.mxu0 0.0
    %548 = vmatpush1.msra.mxu0 0.0
    %549 = vmatprep.subr.mxu0 0.0
    %550 = vmatpush1.msra.mxu0 0.0
    %551 = vmatprep.subr.mxu0 0.0
    %552 = vmatpush1.msra.mxu0 0.0
    %553 = vmatprep.subr.mxu0 0.0
    %554 = vmatpush1.msra.mxu0 0.0
    %555 = vmatprep.subr.mxu0 0.0
    %556 = vmatpush1.msra.mxu0 0.0
    %557 = vmatprep.subr.mxu0 0.0
    %558 = vmatpush1.msra.mxu0 0.0
    %559 = vmatprep.subr.mxu0 0.0
    %560 = vmatpush1.msra.mxu0 0.0
    %561 = vmatprep.subr.mxu0 0.0
    %562 = vmatpush1.msra.mxu0 0.0
    %563 = vmatprep.subr.mxu0 0.0
    %564 = vmatpush1.msra.mxu0 0.0
    %565 = vmatprep.subr.mxu0 0.0
    %566 = vmatpush1.msra.mxu0 0.0
    %567 = vmatprep.subr.mxu0 0.0
    %568 = vmatpush1.msra.mxu0 0.0
    %569 = vmatprep.subr.mxu0 0.0
    %570 = vmatpush1.msra.mxu0 0.0
    %571 = vmatprep.subr.mxu0 0.0
    %572 = vmatpush1.msra.mxu0 0.0
    %573 = vmatprep.subr.mxu0 0.0
    %574 = vmatpush1.msra.mxu0 0.0
    %575 = vmatprep.subr.mxu0 0.0
    %576 = vmatpush1.msra.mxu0 0.0
    %577 = vmatprep.subr.mxu0 0.0
    %578 = vmatpush1.msra.mxu0 0.0
    %579 = vmatprep.subr.mxu0 0.0
    %580 = vmatpush1.msra.mxu0 0.0
    %581 = vmatprep.mubr.f32.mxu0 0.0
    %582 = vmatmul.mubr.f32.gmra.mrb[0].mxu0 %v515
    %v583 = vpop.f32.mrb[0].mxu0
    %v584 = vadd.f32 0.0, %v583
    %v585 = vpop.f32.mrb[0].mxu0
    %586 = vdwg.mxu0
    %v587 = vadd.f32 %v185, %v584
    %v588 = vtanh.pop %v587
    %589 = vst.msk [vmem:[#allocation11 + $0x8] sm:$0x3] %vm269, %v588
    %v591 = vsel %vm193, %v588, 0
    %593 = vmatprep.subr.mxu0 0.0
    %594 = vmatpush1.msra.mxu0 %v188
    %595 = vmatprep.subr.mxu0 0.0
    %596 = vmatpush1.msra.mxu0 %v189
    %597 = vmatprep.subr.mxu0 0.0
    %598 = vmatpush1.msra.mxu0 %v190
    %599 = vmatprep.subr.mxu0 0.0
    %600 = vmatpush1.msra.mxu0 %v191
    %601 = vmatprep.subr.mxu0 0.0
    %602 = vmatpush1.msra.mxu0 0.0
    %603 = vmatprep.subr.mxu0 0.0
    %604 = vmatpush1.msra.mxu0 0.0
    %605 = vmatprep.subr.mxu0 0.0
    %606 = vmatpush1.msra.mxu0 0.0
    %607 = vmatprep.subr.mxu0 0.0
    %608 = vmatpush1.msra.mxu0 0.0
    %609 = vmatprep.subr.mxu0 0.0
    %610 = vmatpush1.msra.mxu0 0.0
    %611 = vmatprep.subr.mxu0 0.0
    %612 = vmatpush1.msra.mxu0 0.0
    %613 = vmatprep.subr.mxu0 0.0
    %614 = vmatpush1.msra.mxu0 0.0
    %615 = vmatprep.subr.mxu0 0.0
    %616 = vmatpush1.msra.mxu0 0.0
    %617 = vmatprep.subr.mxu0 0.0
    %618 = vmatpush1.msra.mxu0 0.0
    %619 = vmatprep.subr.mxu0 0.0
    %620 = vmatpush1.msra.mxu0 0.0
    %621 = vmatprep.subr.mxu0 0.0
    %622 = vmatpush1.msra.mxu0 0.0
    %623 = vmatprep.subr.mxu0 0.0
    %624 = vmatpush1.msra.mxu0 0.0
    %625 = vmatprep.subr.mxu0 0.0
    %626 = vmatpush1.msra.mxu0 0.0
    %627 = vmatprep.subr.mxu0 0.0
    %628 = vmatpush1.msra.mxu0 0.0
    %629 = vmatprep.subr.mxu0 0.0
    %630 = vmatpush1.msra.mxu0 0.0
    %631 = vmatprep.subr.mxu0 0.0
    %632 = vmatpush1.msra.mxu0 0.0
    %633 = vmatprep.subr.mxu0 0.0
    %634 = vmatpush1.msra.mxu0 0.0
    %635 = vmatprep.subr.mxu0 0.0
    %636 = vmatpush1.msra.mxu0 0.0
    %637 = vmatprep.subr.mxu0 0.0
    %638 = vmatpush1.msra.mxu0 0.0
    %639 = vmatprep.subr.mxu0 0.0
    %640 = vmatpush1.msra.mxu0 0.0
    %641 = vmatprep.subr.mxu0 0.0
    %642 = vmatpush1.msra.mxu0 0.0
    %643 = vmatprep.subr.mxu0 0.0
    %644 = vmatpush1.msra.mxu0 0.0
    %645 = vmatprep.subr.mxu0 0.0
    %646 = vmatpush1.msra.mxu0 0.0
    %647 = vmatprep.subr.mxu0 0.0
    %648 = vmatpush1.msra.mxu0 0.0
    %649 = vmatprep.subr.mxu0 0.0
    %650 = vmatpush1.msra.mxu0 0.0
    %651 = vmatprep.subr.mxu0 0.0
    %652 = vmatpush1.msra.mxu0 0.0
    %653 = vmatprep.subr.mxu0 0.0
    %654 = vmatpush1.msra.mxu0 0.0
    %655 = vmatprep.subr.mxu0 0.0
    %656 = vmatpush1.msra.mxu0 0.0
    %657 = vmatprep.mubr.f32.mxu0 0.0
    %658 = vmatmul.mubr.f32.gmra.mrb[0].mxu0 %v591
    %v659 = vpop.f32.mrb[0].mxu0
    %v660 = vadd.f32 0.0, %v659
    %v661 = vpop.f32.mrb[0].mxu0
    %662 = vdwg.mxu0
    %v664 = vrot.slane %v660, 6
    %v666 = vadd.f32 %v185, %v664
    %v667 = vtanh.pop %v666
    %668 = vst.msk [vmem:[#allocation11 + $0x8] sm:$0xc] %vm349, %v667
    %v670 = vrot.slane %v667, 2
    %v671 = vsel %vm193, %v670, 0
    %673 = vmatprep.subr.mxu0 0.0
    %674 = vmatpush1.msra.mxu0 %v188
    %675 = vmatprep.subr.mxu0 0.0
    %676 = vmatpush1.msra.mxu0 %v189
    %677 = vmatprep.subr.mxu0 0.0
    %678 = vmatpush1.msra.mxu0 %v190
    %679 = vmatprep.subr.mxu0 0.0
    %680 = vmatpush1.msra.mxu0 %v191
    %681 = vmatprep.subr.mxu0 0.0
    %682 = vmatpush1.msra.mxu0 0.0
    %683 = vmatprep.subr.mxu0 0.0
    %684 = vmatpush1.msra.mxu0 0.0
    %685 = vmatprep.subr.mxu0 0.0
    %686 = vmatpush1.msra.mxu0 0.0
    %687 = vmatprep.subr.mxu0 0.0
    %688 = vmatpush1.msra.mxu0 0.0
    %689 = vmatprep.subr.mxu0 0.0
    %690 = vmatpush1.msra.mxu0 0.0
    %691 = vmatprep.subr.mxu0 0.0
    %692 = vmatpush1.msra.mxu0 0.0
    %693 = vmatprep.subr.mxu0 0.0
    %694 = vmatpush1.msra.mxu0 0.0
    %695 = vmatprep.subr.mxu0 0.0
    %696 = vmatpush1.msra.mxu0 0.0
    %697 = vmatprep.subr.mxu0 0.0
    %698 = vmatpush1.msra.mxu0 0.0
    %699 = vmatprep.subr.mxu0 0.0
    %700 = vmatpush1.msra.mxu0 0.0
    %701 = vmatprep.subr.mxu0 0.0
    %702 = vmatpush1.msra.mxu0 0.0
    %703 = vmatprep.subr.mxu0 0.0
    %704 = vmatpush1.msra.mxu0 0.0
    %705 = vmatprep.subr.mxu0 0.0
    %706 = vmatpush1.msra.mxu0 0.0
    %707 = vmatprep.subr.mxu0 0.0
    %708 = vmatpush1.msra.mxu0 0.0
    %709 = vmatprep.subr.mxu0 0.0
    %710 = vmatpush1.msra.mxu0 0.0
    %711 = vmatprep.subr.mxu0 0.0
    %712 = vmatpush1.msra.mxu0 0.0
    %713 = vmatprep.subr.mxu0 0.0
    %714 = vmatpush1.msra.mxu0 0.0
    %715 = vmatprep.subr.mxu0 0.0
    %716 = vmatpush1.msra.mxu0 0.0
    %717 = vmatprep.subr.mxu0 0.0
    %718 = vmatpush1.msra.mxu0 0.0
    %719 = vmatprep.subr.mxu0 0.0
    %720 = vmatpush1.msra.mxu0 0.0
    %721 = vmatprep.subr.mxu0 0.0
    %722 = vmatpush1.msra.mxu0 0.0
    %723 = vmatprep.subr.mxu0 0.0
    %724 = vmatpush1.msra.mxu0 0.0
    %725 = vmatprep.subr.mxu0 0.0
    %726 = vmatpush1.msra.mxu0 0.0
    %727 = vmatprep.subr.mxu0 0.0
    %728 = vmatpush1.msra.mxu0 0.0
    %729 = vmatprep.subr.mxu0 0.0
    %730 = vmatpush1.msra.mxu0 0.0
    %731 = vmatprep.subr.mxu0 0.0
    %732 = vmatpush1.msra.mxu0 0.0
    %733 = vmatprep.subr.mxu0 0.0
    %734 = vmatpush1.msra.mxu0 0.0
    %735 = vmatprep.subr.mxu0 0.0
    %736 = vmatpush1.msra.mxu0 0.0
    %737 = vmatprep.mubr.f32.mxu0 0.0
    %738 = vmatmul.mubr.f32.gmra.mrb[0].mxu0 %v671
    %v739 = vpop.f32.mrb[0].mxu0
    %v740 = vadd.f32 0.0, %v739
    %v741 = vpop.f32.mrb[0].mxu0
    %742 = vdwg.mxu0
    %v744 = vrot.slane %v740, 4
    %v746 = vadd.f32 %v185, %v744
    %v747 = vtanh.pop %v746
    %748 = vst.msk [vmem:[#allocation11 + $0x8] sm:$0x30] %vm430, %v747
    %v750 = vrot.slane %v747, 4
    %v751 = vsel %vm193, %v750, 0
    %753 = vmatprep.subr.mxu0 0.0
    %754 = vmatpush1.msra.mxu0 %v188
    %755 = vmatprep.subr.mxu0 0.0
    %756 = vmatpush1.msra.mxu0 %v189
    %757 = vmatprep.subr.mxu0 0.0
    %758 = vmatpush1.msra.mxu0 %v190
    %759 = vmatprep.subr.mxu0 0.0
    %760 = vmatpush1.msra.mxu0 %v191
    %761 = vmatprep.subr.mxu0 0.0
    %762 = vmatpush1.msra.mxu0 0.0
    %763 = vmatprep.subr.mxu0 0.0
    %764 = vmatpush1.msra.mxu0 0.0
    %765 = vmatprep.subr.mxu0 0.0
    %766 = vmatpush1.msra.mxu0 0.0
    %767 = vmatprep.subr.mxu0 0.0
    %768 = vmatpush1.msra.mxu0 0.0
    %769 = vmatprep.subr.mxu0 0.0
    %770 = vmatpush1.msra.mxu0 0.0
    %771 = vmatprep.subr.mxu0 0.0
    %772 = vmatpush1.msra.mxu0 0.0
    %773 = vmatprep.subr.mxu0 0.0
    %774 = vmatpush1.msra.mxu0 0.0
    %775 = vmatprep.subr.mxu0 0.0
    %776 = vmatpush1.msra.mxu0 0.0
    %777 = vmatprep.subr.mxu0 0.0
    %778 = vmatpush1.msra.mxu0 0.0
    %779 = vmatprep.subr.mxu0 0.0
    %780 = vmatpush1.msra.mxu0 0.0
    %781 = vmatprep.subr.mxu0 0.0
    %782 = vmatpush1.msra.mxu0 0.0
    %783 = vmatprep.subr.mxu0 0.0
    %784 = vmatpush1.msra.mxu0 0.0
    %785 = vmatprep.subr.mxu0 0.0
    %786 = vmatpush1.msra.mxu0 0.0
    %787 = vmatprep.subr.mxu0 0.0
    %788 = vmatpush1.msra.mxu0 0.0
    %789 = vmatprep.subr.mxu0 0.0
    %790 = vmatpush1.msra.mxu0 0.0
    %791 = vmatprep.subr.mxu0 0.0
    %792 = vmatpush1.msra.mxu0 0.0
    %793 = vmatprep.subr.mxu0 0.0
    %794 = vmatpush1.msra.mxu0 0.0
    %795 = vmatprep.subr.mxu0 0.0
    %796 = vmatpush1.msra.mxu0 0.0
    %797 = vmatprep.subr.mxu0 0.0
    %798 = vmatpush1.msra.mxu0 0.0
    %799 = vmatprep.subr.mxu0 0.0
    %800 = vmatpush1.msra.mxu0 0.0
    %801 = vmatprep.subr.mxu0 0.0
    %802 = vmatpush1.msra.mxu0 0.0
    %803 = vmatprep.subr.mxu0 0.0
    %804 = vmatpush1.msra.mxu0 0.0
    %805 = vmatprep.subr.mxu0 0.0
    %806 = vmatpush1.msra.mxu0 0.0
    %807 = vmatprep.subr.mxu0 0.0
    %808 = vmatpush1.msra.mxu0 0.0
    %809 = vmatprep.subr.mxu0 0.0
    %810 = vmatpush1.msra.mxu0 0.0
    %811 = vmatprep.subr.mxu0 0.0
    %812 = vmatpush1.msra.mxu0 0.0
    %813 = vmatprep.subr.mxu0 0.0
    %814 = vmatpush1.msra.mxu0 0.0
    %815 = vmatprep.subr.mxu0 0.0
    %816 = vmatpush1.msra.mxu0 0.0
    %817 = vmatprep.mubr.f32.mxu0 0.0
    %818 = vmatmul.mubr.f32.gmra.mrb[0].mxu0 %v751
    %v819 = vpop.f32.mrb[0].mxu0
    %v820 = vadd.f32 0.0, %v819
    %v821 = vpop.f32.mrb[0].mxu0
    %822 = vdwg.mxu0
    %v824 = vrot.slane %v820, 2
    %v826 = vadd.f32 %v185, %v824
    %v827 = vtanh.pop %v826
    %828 = vst.msk [vmem:[#allocation11 + $0x8] sm:$0xc0] %vm511, %v827
    %829 = vst.msk [vmem:[#allocation12 - $0x6] sm:$0xc0] %vm511, %v827
    %v830 = vld [vmem:[#allocation11] sm:$0xff]
    %v831 = vld [vmem:[#allocation11 + $0x8] sm:$0xff]
    %s832 = scalar_lea.vmem [#allocation8], 32
    %v833 = vld [vmem:[%s832] sm:$0xff]
    %v834 = vld [vmem:[%s832 + $0x8] sm:$0xff]
    %v835 = vld [vmem:[%s832 + $0x10] sm:$0xff]
    %v836 = vld [vmem:[%s832 + $0x18] sm:$0xff]
    %s837 = scalar_lea.vmem %s5, 1
    %v838 = vld [vmem:[%s837] sm:$0x1]
    %v840 = vlaneseq
    %v841 = vshrl.u32 %v840, 7
    %v842 = vsub.s32 0, %v841
    %v843 = vrot.slane %v838, %v842
    %v846 = vsel %vm193, %v830, 0
    %v849 = vsel %vm193, %v831, 0
    %851 = vmatprep.subr.mxu0 0.0
    %852 = vmatpush1.msra.mxu0 %v833
    %853 = vmatprep.subr.mxu0 0.0
    %854 = vmatpush1.msra.mxu0 %v834
    %855 = vmatprep.subr.mxu0 0.0
    %856 = vmatpush1.msra.mxu0 %v835
    %857 = vmatprep.subr.mxu0 0.0
    %858 = vmatpush1.msra.mxu0 %v836
    %859 = vmatprep.subr.mxu0 0.0
    %860 = vmatpush1.msra.mxu0 0.0
    %861 = vmatprep.subr.mxu0 0.0
    %862 = vmatpush1.msra.mxu0 0.0
    %863 = vmatprep.subr.mxu0 0.0
    %864 = vmatpush1.msra.mxu0 0.0
    %865 = vmatprep.subr.mxu0 0.0
    %866 = vmatpush1.msra.mxu0 0.0
    %867 = vmatprep.subr.mxu0 0.0
    %868 = vmatpush1.msra.mxu0 0.0
    %869 = vmatprep.subr.mxu0 0.0
    %870 = vmatpush1.msra.mxu0 0.0
    %871 = vmatprep.subr.mxu0 0.0
    %872 = vmatpush1.msra.mxu0 0.0
    %873 = vmatprep.subr.mxu0 0.0
    %874 = vmatpush1.msra.mxu0 0.0
    %875 = vmatprep.subr.mxu0 0.0
    %876 = vmatpush1.msra.mxu0 0.0
    %877 = vmatprep.subr.mxu0 0.0
    %878 = vmatpush1.msra.mxu0 0.0
    %879 = vmatprep.subr.mxu0 0.0
    %880 = vmatpush1.msra.mxu0 0.0
    %881 = vmatprep.subr.mxu0 0.0
    %882 = vmatpush1.msra.mxu0 0.0
    %883 = vmatprep.subr.mxu0 0.0
    %884 = vmatpush1.msra.mxu0 0.0
    %885 = vmatprep.subr.mxu0 0.0
    %886 = vmatpush1.msra.mxu0 0.0
    %887 = vmatprep.subr.mxu0 0.0
    %888 = vmatpush1.msra.mxu0 0.0
    %889 = vmatprep.subr.mxu0 0.0
    %890 = vmatpush1.msra.mxu0 0.0
    %891 = vmatprep.subr.mxu0 0.0
    %892 = vmatpush1.msra.mxu0 0.0
    %893 = vmatprep.subr.mxu0 0.0
    %894 = vmatpush1.msra.mxu0 0.0
    %895 = vmatprep.subr.mxu0 0.0
    %896 = vmatpush1.msra.mxu0 0.0
    %897 = vmatprep.subr.mxu0 0.0
    %898 = vmatpush1.msra.mxu0 0.0
    %899 = vmatprep.subr.mxu0 0.0
    %900 = vmatpush1.msra.mxu0 0.0
    %901 = vmatprep.subr.mxu0 0.0
    %902 = vmatpush1.msra.mxu0 0.0
    %903 = vmatprep.subr.mxu0 0.0
    %904 = vmatpush1.msra.mxu0 0.0
    %905 = vmatprep.subr.mxu0 0.0
    %906 = vmatpush1.msra.mxu0 0.0
    %907 = vmatprep.subr.mxu0 0.0
    %908 = vmatpush1.msra.mxu0 0.0
    %909 = vmatprep.subr.mxu0 0.0
    %910 = vmatpush1.msra.mxu0 0.0
    %911 = vmatprep.subr.mxu0 0.0
    %912 = vmatpush1.msra.mxu0 0.0
    %913 = vmatprep.subr.mxu0 0.0
    %914 = vmatpush1.msra.mxu0 0.0
    %915 = vmatprep.mubr.f32.mxu0 0.0
    %916 = vmatmul.mubr.f32.gmra.mrb[0].mxu0 %v846
    %v917 = vpop.f32.mrb[0].mxu0
    %v918 = vadd.f32 %v843, %v917
    %v919 = vpop.f32.mrb[0].mxu0
    %920 = vmatprep.mubr.f32.mxu0 0.0
    %921 = vmatmul.mubr.f32.gmra.mrb[0].mxu0 %v849
    %v922 = vpop.f32.mrb[0].mxu0
    %v923 = vadd.f32 %v843, %v922
    %v924 = vpop.f32.mrb[0].mxu0
    %925 = vdwg.mxu0
    %s926 = scalar_lea.vmem [#allocation10], 32
    %v927 = vld [vmem:[%s926] sm:$0xff]
    %v928 = vld [vmem:[%s926 + $0x8] sm:$0xff]
    %v929 = vld [vmem:[%s926 + $0x10] sm:$0xff]
    %v930 = vld [vmem:[%s926 + $0x18] sm:$0xff]
    %s931 = scalar_lea.vmem [#allocation5], 2
    %v932 = vld [vmem:[%s931] sm:$0x3]
    %v934 = vsel %vm193, %v932, 0
    %936 = vmatprep.subr.mxu0 0.0
    %937 = vmatpush1.msra.mxu0 %v927
    %938 = vmatprep.subr.mxu0 0.0
    %939 = vmatpush1.msra.mxu0 %v928
    %940 = vmatprep.subr.mxu0 0.0
    %941 = vmatpush1.msra.mxu0 %v929
    %942 = vmatprep.subr.mxu0 0.0
    %943 = vmatpush1.msra.mxu0 %v930
    %944 = vmatprep.subr.mxu0 0.0
    %945 = vmatpush1.msra.mxu0 0.0
    %946 = vmatprep.subr.mxu0 0.0
    %947 = vmatpush1.msra.mxu0 0.0
    %948 = vmatprep.subr.mxu0 0.0
    %949 = vmatpush1.msra.mxu0 0.0
    %950 = vmatprep.subr.mxu0 0.0
    %951 = vmatpush1.msra.mxu0 0.0
    %952 = vmatprep.subr.mxu0 0.0
    %953 = vmatpush1.msra.mxu0 0.0
    %954 = vmatprep.subr.mxu0 0.0
    %955 = vmatpush1.msra.mxu0 0.0
    %956 = vmatprep.subr.mxu0 0.0
    %957 = vmatpush1.msra.mxu0 0.0
    %958 = vmatprep.subr.mxu0 0.0
    %959 = vmatpush1.msra.mxu0 0.0
    %960 = vmatprep.subr.mxu0 0.0
    %961 = vmatpush1.msra.mxu0 0.0
    %962 = vmatprep.subr.mxu0 0.0
    %963 = vmatpush1.msra.mxu0 0.0
    %964 = vmatprep.subr.mxu0 0.0
    %965 = vmatpush1.msra.mxu0 0.0
    %966 = vmatprep.subr.mxu0 0.0
    %967 = vmatpush1.msra.mxu0 0.0
    %968 = vmatprep.subr.mxu0 0.0
    %969 = vmatpush1.msra.mxu0 0.0
    %970 = vmatprep.subr.mxu0 0.0
    %971 = vmatpush1.msra.mxu0 0.0
    %972 = vmatprep.subr.mxu0 0.0
    %973 = vmatpush1.msra.mxu0 0.0
    %974 = vmatprep.subr.mxu0 0.0
    %975 = vmatpush1.msra.mxu0 0.0
    %976 = vmatprep.subr.mxu0 0.0
    %977 = vmatpush1.msra.mxu0 0.0
    %978 = vmatprep.subr.mxu0 0.0
    %979 = vmatpush1.msra.mxu0 0.0
    %980 = vmatprep.subr.mxu0 0.0
    %981 = vmatpush1.msra.mxu0 0.0
    %982 = vmatprep.subr.mxu0 0.0
    %983 = vmatpush1.msra.mxu0 0.0
    %984 = vmatprep.subr.mxu0 0.0
    %985 = vmatpush1.msra.mxu0 0.0
    %986 = vmatprep.subr.mxu0 0.0
    %987 = vmatpush1.msra.mxu0 0.0
    %988 = vmatprep.subr.mxu0 0.0
    %989 = vmatpush1.msra.mxu0 0.0
    %990 = vmatprep.subr.mxu0 0.0
    %991 = vmatpush1.msra.mxu0 0.0
    %992 = vmatprep.subr.mxu0 0.0
    %993 = vmatpush1.msra.mxu0 0.0
    %994 = vmatprep.subr.mxu0 0.0
    %995 = vmatpush1.msra.mxu0 0.0
    %996 = vmatprep.subr.mxu0 0.0
    %997 = vmatpush1.msra.mxu0 0.0
    %998 = vmatprep.subr.mxu0 0.0
    %999 = vmatpush1.msra.mxu0 0.0
    %1000 = vmatprep.mubr.f32.mxu0 0.0
    %1001 = vmatmul.mubr.f32.gmra.mrb[0].mxu0 %v934
    %v1002 = vpop.f32.mrb[0].mxu0
    %v1003 = vadd.f32 0.0, %v1002
    %v1004 = vpop.f32.mrb[0].mxu0
    %1005 = vdwg.mxu0
    %v1006 = vadd.f32 %v918, %v1003
    %v1007 = vtanh.pop %v1006
    %1008 = vst.msk [vmem:[#allocation11] sm:$0x3] %vm269, %v1007
    %v1010 = vsel %vm193, %v1007, 0
    %1012 = vmatprep.subr.mxu0 0.0
    %1013 = vmatpush1.msra.mxu0 %v927
    %1014 = vmatprep.subr.mxu0 0.0
    %1015 = vmatpush1.msra.mxu0 %v928
    %1016 = vmatprep.subr.mxu0 0.0
    %1017 = vmatpush1.msra.mxu0 %v929
    %1018 = vmatprep.subr.mxu0 0.0
    %1019 = vmatpush1.msra.mxu0 %v930
    %1020 = vmatprep.subr.mxu0 0.0
    %1021 = vmatpush1.msra.mxu0 0.0
    %1022 = vmatprep.subr.mxu0 0.0
    %1023 = vmatpush1.msra.mxu0 0.0
    %1024 = vmatprep.subr.mxu0 0.0
    %1025 = vmatpush1.msra.mxu0 0.0
    %1026 = vmatprep.subr.mxu0 0.0
    %1027 = vmatpush1.msra.mxu0 0.0
    %1028 = vmatprep.subr.mxu0 0.0
    %1029 = vmatpush1.msra.mxu0 0.0
    %1030 = vmatprep.subr.mxu0 0.0
    %1031 = vmatpush1.msra.mxu0 0.0
    %1032 = vmatprep.subr.mxu0 0.0
    %1033 = vmatpush1.msra.mxu0 0.0
    %1034 = vmatprep.subr.mxu0 0.0
    %1035 = vmatpush1.msra.mxu0 0.0
    %1036 = vmatprep.subr.mxu0 0.0
    %1037 = vmatpush1.msra.mxu0 0.0
    %1038 = vmatprep.subr.mxu0 0.0
    %1039 = vmatpush1.msra.mxu0 0.0
    %1040 = vmatprep.subr.mxu0 0.0
    %1041 = vmatpush1.msra.mxu0 0.0
    %1042 = vmatprep.subr.mxu0 0.0
    %1043 = vmatpush1.msra.mxu0 0.0
    %1044 = vmatprep.subr.mxu0 0.0
    %1045 = vmatpush1.msra.mxu0 0.0
    %1046 = vmatprep.subr.mxu0 0.0
    %1047 = vmatpush1.msra.mxu0 0.0
    %1048 = vmatprep.subr.mxu0 0.0
    %1049 = vmatpush1.msra.mxu0 0.0
    %1050 = vmatprep.subr.mxu0 0.0
    %1051 = vmatpush1.msra.mxu0 0.0
    %1052 = vmatprep.subr.mxu0 0.0
    %1053 = vmatpush1.msra.mxu0 0.0
    %1054 = vmatprep.subr.mxu0 0.0
    %1055 = vmatpush1.msra.mxu0 0.0
    %1056 = vmatprep.subr.mxu0 0.0
    %1057 = vmatpush1.msra.mxu0 0.0
    %1058 = vmatprep.subr.mxu0 0.0
    %1059 = vmatpush1.msra.mxu0 0.0
    %1060 = vmatprep.subr.mxu0 0.0
    %1061 = vmatpush1.msra.mxu0 0.0
    %1062 = vmatprep.subr.mxu0 0.0
    %1063 = vmatpush1.msra.mxu0 0.0
    %1064 = vmatprep.subr.mxu0 0.0
    %1065 = vmatpush1.msra.mxu0 0.0
    %1066 = vmatprep.subr.mxu0 0.0
    %1067 = vmatpush1.msra.mxu0 0.0
    %1068 = vmatprep.subr.mxu0 0.0
    %1069 = vmatpush1.msra.mxu0 0.0
    %1070 = vmatprep.subr.mxu0 0.0
    %1071 = vmatpush1.msra.mxu0 0.0
    %1072 = vmatprep.subr.mxu0 0.0
    %1073 = vmatpush1.msra.mxu0 0.0
    %1074 = vmatprep.subr.mxu0 0.0
    %1075 = vmatpush1.msra.mxu0 0.0
    %1076 = vmatprep.mubr.f32.mxu0 0.0
    %1077 = vmatmul.mubr.f32.gmra.mrb[0].mxu0 %v1010
    %v1078 = vpop.f32.mrb[0].mxu0
    %v1079 = vadd.f32 0.0, %v1078
    %v1080 = vpop.f32.mrb[0].mxu0
    %1081 = vdwg.mxu0
    %v1083 = vrot.slane %v1079, 6
    %v1085 = vadd.f32 %v918, %v1083
    %v1086 = vtanh.pop %v1085
    %1087 = vst.msk [vmem:[#allocation11] sm:$0xc] %vm349, %v1086
    %v1089 = vrot.slane %v1086, 2
    %v1090 = vsel %vm193, %v1089, 0
    %1092 = vmatprep.subr.mxu0 0.0
    %1093 = vmatpush1.msra.mxu0 %v927
    %1094 = vmatprep.subr.mxu0 0.0
    %1095 = vmatpush1.msra.mxu0 %v928
    %1096 = vmatprep.subr.mxu0 0.0
    %1097 = vmatpush1.msra.mxu0 %v929
    %1098 = vmatprep.subr.mxu0 0.0
    %1099 = vmatpush1.msra.mxu0 %v930
    %1100 = vmatprep.subr.mxu0 0.0
    %1101 = vmatpush1.msra.mxu0 0.0
    %1102 = vmatprep.subr.mxu0 0.0
    %1103 = vmatpush1.msra.mxu0 0.0
    %1104 = vmatprep.subr.mxu0 0.0
    %1105 = vmatpush1.msra.mxu0 0.0
    %1106 = vmatprep.subr.mxu0 0.0
    %1107 = vmatpush1.msra.mxu0 0.0
    %1108 = vmatprep.subr.mxu0 0.0
    %1109 = vmatpush1.msra.mxu0 0.0
    %1110 = vmatprep.subr.mxu0 0.0
    %1111 = vmatpush1.msra.mxu0 0.0
    %1112 = vmatprep.subr.mxu0 0.0
    %1113 = vmatpush1.msra.mxu0 0.0
    %1114 = vmatprep.subr.mxu0 0.0
    %1115 = vmatpush1.msra.mxu0 0.0
    %1116 = vmatprep.subr.mxu0 0.0
    %1117 = vmatpush1.msra.mxu0 0.0
    %1118 = vmatprep.subr.mxu0 0.0
    %1119 = vmatpush1.msra.mxu0 0.0
    %1120 = vmatprep.subr.mxu0 0.0
    %1121 = vmatpush1.msra.mxu0 0.0
    %1122 = vmatprep.subr.mxu0 0.0
    %1123 = vmatpush1.msra.mxu0 0.0
    %1124 = vmatprep.subr.mxu0 0.0
    %1125 = vmatpush1.msra.mxu0 0.0
    %1126 = vmatprep.subr.mxu0 0.0
    %1127 = vmatpush1.msra.mxu0 0.0
    %1128 = vmatprep.subr.mxu0 0.0
    %1129 = vmatpush1.msra.mxu0 0.0
    %1130 = vmatprep.subr.mxu0 0.0
    %1131 = vmatpush1.msra.mxu0 0.0
    %1132 = vmatprep.subr.mxu0 0.0
    %1133 = vmatpush1.msra.mxu0 0.0
    %1134 = vmatprep.subr.mxu0 0.0
    %1135 = vmatpush1.msra.mxu0 0.0
    %1136 = vmatprep.subr.mxu0 0.0
    %1137 = vmatpush1.msra.mxu0 0.0
    %1138 = vmatprep.subr.mxu0 0.0
    %1139 = vmatpush1.msra.mxu0 0.0
    %1140 = vmatprep.subr.mxu0 0.0
    %1141 = vmatpush1.msra.mxu0 0.0
    %1142 = vmatprep.subr.mxu0 0.0
    %1143 = vmatpush1.msra.mxu0 0.0
    %1144 = vmatprep.subr.mxu0 0.0
    %1145 = vmatpush1.msra.mxu0 0.0
    %1146 = vmatprep.subr.mxu0 0.0
    %1147 = vmatpush1.msra.mxu0 0.0
    %1148 = vmatprep.subr.mxu0 0.0
    %1149 = vmatpush1.msra.mxu0 0.0
    %1150 = vmatprep.subr.mxu0 0.0
    %1151 = vmatpush1.msra.mxu0 0.0
    %1152 = vmatprep.subr.mxu0 0.0
    %1153 = vmatpush1.msra.mxu0 0.0
    %1154 = vmatprep.subr.mxu0 0.0
    %1155 = vmatpush1.msra.mxu0 0.0
    %1156 = vmatprep.mubr.f32.mxu0 0.0
    %1157 = vmatmul.mubr.f32.gmra.mrb[0].mxu0 %v1090
    %v1158 = vpop.f32.mrb[0].mxu0
    %v1159 = vadd.f32 0.0, %v1158
    %v1160 = vpop.f32.mrb[0].mxu0
    %1161 = vdwg.mxu0
    %v1163 = vrot.slane %v1159, 4
    %v1165 = vadd.f32 %v918, %v1163
    %v1166 = vtanh.pop %v1165
    %1167 = vst.msk [vmem:[#allocation11] sm:$0x30] %vm430, %v1166
    %v1169 = vrot.slane %v1166, 4
    %v1170 = vsel %vm193, %v1169, 0
    %1172 = vmatprep.subr.mxu0 0.0
    %1173 = vmatpush1.msra.mxu0 %v927
    %1174 = vmatprep.subr.mxu0 0.0
    %1175 = vmatpush1.msra.mxu0 %v928
    %1176 = vmatprep.subr.mxu0 0.0
    %1177 = vmatpush1.msra.mxu0 %v929
    %1178 = vmatprep.subr.mxu0 0.0
    %1179 = vmatpush1.msra.mxu0 %v930
    %1180 = vmatprep.subr.mxu0 0.0
    %1181 = vmatpush1.msra.mxu0 0.0
    %1182 = vmatprep.subr.mxu0 0.0
    %1183 = vmatpush1.msra.mxu0 0.0
    %1184 = vmatprep.subr.mxu0 0.0
    %1185 = vmatpush1.msra.mxu0 0.0
    %1186 = vmatprep.subr.mxu0 0.0
    %1187 = vmatpush1.msra.mxu0 0.0
    %1188 = vmatprep.subr.mxu0 0.0
    %1189 = vmatpush1.msra.mxu0 0.0
    %1190 = vmatprep.subr.mxu0 0.0
    %1191 = vmatpush1.msra.mxu0 0.0
    %1192 = vmatprep.subr.mxu0 0.0
    %1193 = vmatpush1.msra.mxu0 0.0
    %1194 = vmatprep.subr.mxu0 0.0
    %1195 = vmatpush1.msra.mxu0 0.0
    %1196 = vmatprep.subr.mxu0 0.0
    %1197 = vmatpush1.msra.mxu0 0.0
    %1198 = vmatprep.subr.mxu0 0.0
    %1199 = vmatpush1.msra.mxu0 0.0
    %1200 = vmatprep.subr.mxu0 0.0
    %1201 = vmatpush1.msra.mxu0 0.0
    %1202 = vmatprep.subr.mxu0 0.0
    %1203 = vmatpush1.msra.mxu0 0.0
    %1204 = vmatprep.subr.mxu0 0.0
    %1205 = vmatpush1.msra.mxu0 0.0
    %1206 = vmatprep.subr.mxu0 0.0
    %1207 = vmatpush1.msra.mxu0 0.0
    %1208 = vmatprep.subr.mxu0 0.0
    %1209 = vmatpush1.msra.mxu0 0.0
    %1210 = vmatprep.subr.mxu0 0.0
    %1211 = vmatpush1.msra.mxu0 0.0
    %1212 = vmatprep.subr.mxu0 0.0
    %1213 = vmatpush1.msra.mxu0 0.0
    %1214 = vmatprep.subr.mxu0 0.0
    %1215 = vmatpush1.msra.mxu0 0.0
    %1216 = vmatprep.subr.mxu0 0.0
    %1217 = vmatpush1.msra.mxu0 0.0
    %1218 = vmatprep.subr.mxu0 0.0
    %1219 = vmatpush1.msra.mxu0 0.0
    %1220 = vmatprep.subr.mxu0 0.0
    %1221 = vmatpush1.msra.mxu0 0.0
    %1222 = vmatprep.subr.mxu0 0.0
    %1223 = vmatpush1.msra.mxu0 0.0
    %1224 = vmatprep.subr.mxu0 0.0
    %1225 = vmatpush1.msra.mxu0 0.0
    %1226 = vmatprep.subr.mxu0 0.0
    %1227 = vmatpush1.msra.mxu0 0.0
    %1228 = vmatprep.subr.mxu0 0.0
    %1229 = vmatpush1.msra.mxu0 0.0
    %1230 = vmatprep.subr.mxu0 0.0
    %1231 = vmatpush1.msra.mxu0 0.0
    %1232 = vmatprep.subr.mxu0 0.0
    %1233 = vmatpush1.msra.mxu0 0.0
    %1234 = vmatprep.subr.mxu0 0.0
    %1235 = vmatpush1.msra.mxu0 0.0
    %1236 = vmatprep.mubr.f32.mxu0 0.0
    %1237 = vmatmul.mubr.f32.gmra.mrb[0].mxu0 %v1170
    %v1238 = vpop.f32.mrb[0].mxu0
    %v1239 = vadd.f32 0.0, %v1238
    %v1240 = vpop.f32.mrb[0].mxu0
    %1241 = vdwg.mxu0
    %v1243 = vrot.slane %v1239, 2
    %v1245 = vadd.f32 %v918, %v1243
    %v1246 = vtanh.pop %v1245
    %1247 = vst.msk [vmem:[#allocation11] sm:$0xc0] %vm511, %v1246
    %v1249 = vrot.slane %v1246, 6
    %v1250 = vsel %vm193, %v1249, 0
    %1252 = vmatprep.subr.mxu0 0.0
    %1253 = vmatpush1.msra.mxu0 %v927
    %1254 = vmatprep.subr.mxu0 0.0
    %1255 = vmatpush1.msra.mxu0 %v928
    %1256 = vmatprep.subr.mxu0 0.0
    %1257 = vmatpush1.msra.mxu0 %v929
    %1258 = vmatprep.subr.mxu0 0.0
    %1259 = vmatpush1.msra.mxu0 %v930
    %1260 = vmatprep.subr.mxu0 0.0
    %1261 = vmatpush1.msra.mxu0 0.0
    %1262 = vmatprep.subr.mxu0 0.0
    %1263 = vmatpush1.msra.mxu0 0.0
    %1264 = vmatprep.subr.mxu0 0.0
    %1265 = vmatpush1.msra.mxu0 0.0
    %1266 = vmatprep.subr.mxu0 0.0
    %1267 = vmatpush1.msra.mxu0 0.0
    %1268 = vmatprep.subr.mxu0 0.0
    %1269 = vmatpush1.msra.mxu0 0.0
    %1270 = vmatprep.subr.mxu0 0.0
    %1271 = vmatpush1.msra.mxu0 0.0
    %1272 = vmatprep.subr.mxu0 0.0
    %1273 = vmatpush1.msra.mxu0 0.0
    %1274 = vmatprep.subr.mxu0 0.0
    %1275 = vmatpush1.msra.mxu0 0.0
    %1276 = vmatprep.subr.mxu0 0.0
    %1277 = vmatpush1.msra.mxu0 0.0
    %1278 = vmatprep.subr.mxu0 0.0
    %1279 = vmatpush1.msra.mxu0 0.0
    %1280 = vmatprep.subr.mxu0 0.0
    %1281 = vmatpush1.msra.mxu0 0.0
    %1282 = vmatprep.subr.mxu0 0.0
    %1283 = vmatpush1.msra.mxu0 0.0
    %1284 = vmatprep.subr.mxu0 0.0
    %1285 = vmatpush1.msra.mxu0 0.0
    %1286 = vmatprep.subr.mxu0 0.0
    %1287 = vmatpush1.msra.mxu0 0.0
    %1288 = vmatprep.subr.mxu0 0.0
    %1289 = vmatpush1.msra.mxu0 0.0
    %1290 = vmatprep.subr.mxu0 0.0
    %1291 = vmatpush1.msra.mxu0 0.0
    %1292 = vmatprep.subr.mxu0 0.0
    %1293 = vmatpush1.msra.mxu0 0.0
    %1294 = vmatprep.subr.mxu0 0.0
    %1295 = vmatpush1.msra.mxu0 0.0
    %1296 = vmatprep.subr.mxu0 0.0
    %1297 = vmatpush1.msra.mxu0 0.0
    %1298 = vmatprep.subr.mxu0 0.0
    %1299 = vmatpush1.msra.mxu0 0.0
    %1300 = vmatprep.subr.mxu0 0.0
    %1301 = vmatpush1.msra.mxu0 0.0
    %1302 = vmatprep.subr.mxu0 0.0
    %1303 = vmatpush1.msra.mxu0 0.0
    %1304 = vmatprep.subr.mxu0 0.0
    %1305 = vmatpush1.msra.mxu0 0.0
    %1306 = vmatprep.subr.mxu0 0.0
    %1307 = vmatpush1.msra.mxu0 0.0
    %1308 = vmatprep.subr.mxu0 0.0
    %1309 = vmatpush1.msra.mxu0 0.0
    %1310 = vmatprep.subr.mxu0 0.0
    %1311 = vmatpush1.msra.mxu0 0.0
    %1312 = vmatprep.subr.mxu0 0.0
    %1313 = vmatpush1.msra.mxu0 0.0
    %1314 = vmatprep.subr.mxu0 0.0
    %1315 = vmatpush1.msra.mxu0 0.0
    %1316 = vmatprep.mubr.f32.mxu0 0.0
    %1317 = vmatmul.mubr.f32.gmra.mrb[0].mxu0 %v1250
    %v1318 = vpop.f32.mrb[0].mxu0
    %v1319 = vadd.f32 0.0, %v1318
    %v1320 = vpop.f32.mrb[0].mxu0
    %1321 = vdwg.mxu0
    %v1322 = vadd.f32 %v923, %v1319
    %v1323 = vtanh.pop %v1322
    %1324 = vst.msk [vmem:[#allocation11 + $0x8] sm:$0x3] %vm269, %v1323
    %v1326 = vsel %vm193, %v1323, 0
    %1328 = vmatprep.subr.mxu0 0.0
    %1329 = vmatpush1.msra.mxu0 %v927
    %1330 = vmatprep.subr.mxu0 0.0
    %1331 = vmatpush1.msra.mxu0 %v928
    %1332 = vmatprep.subr.mxu0 0.0
    %1333 = vmatpush1.msra.mxu0 %v929
    %1334 = vmatprep.subr.mxu0 0.0
    %1335 = vmatpush1.msra.mxu0 %v930
    %1336 = vmatprep.subr.mxu0 0.0
    %1337 = vmatpush1.msra.mxu0 0.0
    %1338 = vmatprep.subr.mxu0 0.0
    %1339 = vmatpush1.msra.mxu0 0.0
    %1340 = vmatprep.subr.mxu0 0.0
    %1341 = vmatpush1.msra.mxu0 0.0
    %1342 = vmatprep.subr.mxu0 0.0
    %1343 = vmatpush1.msra.mxu0 0.0
    %1344 = vmatprep.subr.mxu0 0.0
    %1345 = vmatpush1.msra.mxu0 0.0
    %1346 = vmatprep.subr.mxu0 0.0
    %1347 = vmatpush1.msra.mxu0 0.0
    %1348 = vmatprep.subr.mxu0 0.0
    %1349 = vmatpush1.msra.mxu0 0.0
    %1350 = vmatprep.subr.mxu0 0.0
    %1351 = vmatpush1.msra.mxu0 0.0
    %1352 = vmatprep.subr.mxu0 0.0
    %1353 = vmatpush1.msra.mxu0 0.0
    %1354 = vmatprep.subr.mxu0 0.0
    %1355 = vmatpush1.msra.mxu0 0.0
    %1356 = vmatprep.subr.mxu0 0.0
    %1357 = vmatpush1.msra.mxu0 0.0
    %1358 = vmatprep.subr.mxu0 0.0
    %1359 = vmatpush1.msra.mxu0 0.0
    %1360 = vmatprep.subr.mxu0 0.0
    %1361 = vmatpush1.msra.mxu0 0.0
    %1362 = vmatprep.subr.mxu0 0.0
    %1363 = vmatpush1.msra.mxu0 0.0
    %1364 = vmatprep.subr.mxu0 0.0
    %1365 = vmatpush1.msra.mxu0 0.0
    %1366 = vmatprep.subr.mxu0 0.0
    %1367 = vmatpush1.msra.mxu0 0.0
    %1368 = vmatprep.subr.mxu0 0.0
    %1369 = vmatpush1.msra.mxu0 0.0
    %1370 = vmatprep.subr.mxu0 0.0
    %1371 = vmatpush1.msra.mxu0 0.0
    %1372 = vmatprep.subr.mxu0 0.0
    %1373 = vmatpush1.msra.mxu0 0.0
    %1374 = vmatprep.subr.mxu0 0.0
    %1375 = vmatpush1.msra.mxu0 0.0
    %1376 = vmatprep.subr.mxu0 0.0
    %1377 = vmatpush1.msra.mxu0 0.0
    %1378 = vmatprep.subr.mxu0 0.0
    %1379 = vmatpush1.msra.mxu0 0.0
    %1380 = vmatprep.subr.mxu0 0.0
    %1381 = vmatpush1.msra.mxu0 0.0
    %1382 = vmatprep.subr.mxu0 0.0
    %1383 = vmatpush1.msra.mxu0 0.0
    %1384 = vmatprep.subr.mxu0 0.0
    %1385 = vmatpush1.msra.mxu0 0.0
    %1386 = vmatprep.subr.mxu0 0.0
    %1387 = vmatpush1.msra.mxu0 0.0
    %1388 = vmatprep.subr.mxu0 0.0
    %1389 = vmatpush1.msra.mxu0 0.0
    %1390 = vmatprep.subr.mxu0 0.0
    %1391 = vmatpush1.msra.mxu0 0.0
    %1392 = vmatprep.mubr.f32.mxu0 0.0
    %1393 = vmatmul.mubr.f32.gmra.mrb[0].mxu0 %v1326
    %v1394 = vpop.f32.mrb[0].mxu0
    %v1395 = vadd.f32 0.0, %v1394
    %v1396 = vpop.f32.mrb[0].mxu0
    %1397 = vdwg.mxu0
    %v1399 = vrot.slane %v1395, 6
    %v1401 = vadd.f32 %v923, %v1399
    %v1402 = vtanh.pop %v1401
    %1403 = vst.msk [vmem:[#allocation11 + $0x8] sm:$0xc] %vm349, %v1402
    %v1405 = vrot.slane %v1402, 2
    %v1406 = vsel %vm193, %v1405, 0
    %1408 = vmatprep.subr.mxu0 0.0
    %1409 = vmatpush1.msra.mxu0 %v927
    %1410 = vmatprep.subr.mxu0 0.0
    %1411 = vmatpush1.msra.mxu0 %v928
    %1412 = vmatprep.subr.mxu0 0.0
    %1413 = vmatpush1.msra.mxu0 %v929
    %1414 = vmatprep.subr.mxu0 0.0
    %1415 = vmatpush1.msra.mxu0 %v930
    %1416 = vmatprep.subr.mxu0 0.0
    %1417 = vmatpush1.msra.mxu0 0.0
    %1418 = vmatprep.subr.mxu0 0.0
    %1419 = vmatpush1.msra.mxu0 0.0
    %1420 = vmatprep.subr.mxu0 0.0
    %1421 = vmatpush1.msra.mxu0 0.0
    %1422 = vmatprep.subr.mxu0 0.0
    %1423 = vmatpush1.msra.mxu0 0.0
    %1424 = vmatprep.subr.mxu0 0.0
    %1425 = vmatpush1.msra.mxu0 0.0
    %1426 = vmatprep.subr.mxu0 0.0
    %1427 = vmatpush1.msra.mxu0 0.0
    %1428 = vmatprep.subr.mxu0 0.0
    %1429 = vmatpush1.msra.mxu0 0.0
    %1430 = vmatprep.subr.mxu0 0.0
    %1431 = vmatpush1.msra.mxu0 0.0
    %1432 = vmatprep.subr.mxu0 0.0
    %1433 = vmatpush1.msra.mxu0 0.0
    %1434 = vmatprep.subr.mxu0 0.0
    %1435 = vmatpush1.msra.mxu0 0.0
    %1436 = vmatprep.subr.mxu0 0.0
    %1437 = vmatpush1.msra.mxu0 0.0
    %1438 = vmatprep.subr.mxu0 0.0
    %1439 = vmatpush1.msra.mxu0 0.0
    %1440 = vmatprep.subr.mxu0 0.0
    %1441 = vmatpush1.msra.mxu0 0.0
    %1442 = vmatprep.subr.mxu0 0.0
    %1443 = vmatpush1.msra.mxu0 0.0
    %1444 = vmatprep.subr.mxu0 0.0
    %1445 = vmatpush1.msra.mxu0 0.0
    %1446 = vmatprep.subr.mxu0 0.0
    %1447 = vmatpush1.msra.mxu0 0.0
    %1448 = vmatprep.subr.mxu0 0.0
    %1449 = vmatpush1.msra.mxu0 0.0
    %1450 = vmatprep.subr.mxu0 0.0
    %1451 = vmatpush1.msra.mxu0 0.0
    %1452 = vmatprep.subr.mxu0 0.0
    %1453 = vmatpush1.msra.mxu0 0.0
    %1454 = vmatprep.subr.mxu0 0.0
    %1455 = vmatpush1.msra.mxu0 0.0
    %1456 = vmatprep.subr.mxu0 0.0
    %1457 = vmatpush1.msra.mxu0 0.0
    %1458 = vmatprep.subr.mxu0 0.0
    %1459 = vmatpush1.msra.mxu0 0.0
    %1460 = vmatprep.subr.mxu0 0.0
    %1461 = vmatpush1.msra.mxu0 0.0
    %1462 = vmatprep.subr.mxu0 0.0
    %1463 = vmatpush1.msra.mxu0 0.0
    %1464 = vmatprep.subr.mxu0 0.0
    %1465 = vmatpush1.msra.mxu0 0.0
    %1466 = vmatprep.subr.mxu0 0.0
    %1467 = vmatpush1.msra.mxu0 0.0
    %1468 = vmatprep.subr.mxu0 0.0
    %1469 = vmatpush1.msra.mxu0 0.0
    %1470 = vmatprep.subr.mxu0 0.0
    %1471 = vmatpush1.msra.mxu0 0.0
    %1472 = vmatprep.mubr.f32.mxu0 0.0
    %1473 = vmatmul.mubr.f32.gmra.mrb[0].mxu0 %v1406
    %v1474 = vpop.f32.mrb[0].mxu0
    %v1475 = vadd.f32 0.0, %v1474
    %v1476 = vpop.f32.mrb[0].mxu0
    %1477 = vdwg.mxu0
    %v1479 = vrot.slane %v1475, 4
    %v1481 = vadd.f32 %v923, %v1479
    %v1482 = vtanh.pop %v1481
    %1483 = vst.msk [vmem:[#allocation11 + $0x8] sm:$0x30] %vm430, %v1482
    %v1485 = vrot.slane %v1482, 4
    %v1486 = vsel %vm193, %v1485, 0
    %1488 = vmatprep.subr.mxu0 0.0
    %1489 = vmatpush1.msra.mxu0 %v927
    %1490 = vmatprep.subr.mxu0 0.0
    %1491 = vmatpush1.msra.mxu0 %v928
    %1492 = vmatprep.subr.mxu0 0.0
    %1493 = vmatpush1.msra.mxu0 %v929
    %1494 = vmatprep.subr.mxu0 0.0
    %1495 = vmatpush1.msra.mxu0 %v930
    %1496 = vmatprep.subr.mxu0 0.0
    %1497 = vmatpush1.msra.mxu0 0.0
    %1498 = vmatprep.subr.mxu0 0.0
    %1499 = vmatpush1.msra.mxu0 0.0
    %1500 = vmatprep.subr.mxu0 0.0
    %1501 = vmatpush1.msra.mxu0 0.0
    %1502 = vmatprep.subr.mxu0 0.0
    %1503 = vmatpush1.msra.mxu0 0.0
    %1504 = vmatprep.subr.mxu0 0.0
    %1505 = vmatpush1.msra.mxu0 0.0
    %1506 = vmatprep.subr.mxu0 0.0
    %1507 = vmatpush1.msra.mxu0 0.0
    %1508 = vmatprep.subr.mxu0 0.0
    %1509 = vmatpush1.msra.mxu0 0.0
    %1510 = vmatprep.subr.mxu0 0.0
    %1511 = vmatpush1.msra.mxu0 0.0
    %1512 = vmatprep.subr.mxu0 0.0
    %1513 = vmatpush1.msra.mxu0 0.0
    %1514 = vmatprep.subr.mxu0 0.0
    %1515 = vmatpush1.msra.mxu0 0.0
    %1516 = vmatprep.subr.mxu0 0.0
    %1517 = vmatpush1.msra.mxu0 0.0
    %1518 = vmatprep.subr.mxu0 0.0
    %1519 = vmatpush1.msra.mxu0 0.0
    %1520 = vmatprep.subr.mxu0 0.0
    %1521 = vmatpush1.msra.mxu0 0.0
    %1522 = vmatprep.subr.mxu0 0.0
    %1523 = vmatpush1.msra.mxu0 0.0
    %1524 = vmatprep.subr.mxu0 0.0
    %1525 = vmatpush1.msra.mxu0 0.0
    %1526 = vmatprep.subr.mxu0 0.0
    %1527 = vmatpush1.msra.mxu0 0.0
    %1528 = vmatprep.subr.mxu0 0.0
    %1529 = vmatpush1.msra.mxu0 0.0
    %1530 = vmatprep.subr.mxu0 0.0
    %1531 = vmatpush1.msra.mxu0 0.0
    %1532 = vmatprep.subr.mxu0 0.0
    %1533 = vmatpush1.msra.mxu0 0.0
    %1534 = vmatprep.subr.mxu0 0.0
    %1535 = vmatpush1.msra.mxu0 0.0
    %1536 = vmatprep.subr.mxu0 0.0
    %1537 = vmatpush1.msra.mxu0 0.0
    %1538 = vmatprep.subr.mxu0 0.0
    %1539 = vmatpush1.msra.mxu0 0.0
    %1540 = vmatprep.subr.mxu0 0.0
    %1541 = vmatpush1.msra.mxu0 0.0
    %1542 = vmatprep.subr.mxu0 0.0
    %1543 = vmatpush1.msra.mxu0 0.0
    %1544 = vmatprep.subr.mxu0 0.0
    %1545 = vmatpush1.msra.mxu0 0.0
    %1546 = vmatprep.subr.mxu0 0.0
    %1547 = vmatpush1.msra.mxu0 0.0
    %1548 = vmatprep.subr.mxu0 0.0
    %1549 = vmatpush1.msra.mxu0 0.0
    %1550 = vmatprep.subr.mxu0 0.0
    %1551 = vmatpush1.msra.mxu0 0.0
    %1552 = vmatprep.mubr.f32.mxu0 0.0
    %1553 = vmatmul.mubr.f32.gmra.mrb[0].mxu0 %v1486
    %v1554 = vpop.f32.mrb[0].mxu0
    %v1555 = vadd.f32 0.0, %v1554
    %v1556 = vpop.f32.mrb[0].mxu0
    %1557 = vdwg.mxu0
    %v1559 = vrot.slane %v1555, 2
    %v1561 = vadd.f32 %v923, %v1559
    %v1562 = vtanh.pop %v1561
    %1563 = vst.msk [vmem:[#allocation11 + $0x8] sm:$0xc0] %vm511, %v1562
    %s1564 = scalar_lea.vmem [#allocation12], 2
    %1565 = vst.msk [vmem:[%s1564 - $0x6] sm:$0xc0] %vm511, %v1562
    // Predicated region
    $region46: #{tpu_custom_call.1} parent=1 // pred_check
      _
    $region47: #{tpu_custom_call.1} parent=1 // pred_check_branch
      %1567 = sbr.rel (0) target = $region49
    $region48: #{tpu_custom_call.1} parent=1 // pred_region
      %s1569 = ssub.s32 256, 256
      %1570 = vsyncadd [#allocation4], %s1569
      %s1571 = sshll.u32 [#allocation11], 4
      %s1572 = int_to_ptr.vmem [resolvable:$true] %s1571
      %1577 = dma.vmem_to_hbm [thread:$0]  %s1572, 256, %s6, [#allocation4], 128, 128, 8
    $region49: #{tpu_custom_call.1} parent=1 // pred_fallthru
      _
    // Predicated region
    $region50: #{tpu_custom_call.1} parent=1 // pred_check
      _
    $region51: #{tpu_custom_call.1} parent=1 // pred_check_branch
      %1579 = sbr.rel (0) target = $region53
    $region52: #{tpu_custom_call.1} parent=1 // pred_region
      %s1581 = ssub.s32 64, 64
      %1582 = vsyncadd [#allocation13], %s1581
      %s1583 = sshll.u32 [#allocation12], 4
      %s1584 = int_to_ptr.vmem [resolvable:$true] %s1583
      %1589 = dma.vmem_to_hbm [thread:$0]  %s1584, 64, %s7, [#allocation13], 32, 32, 2
    $region53: #{tpu_custom_call.1} parent=1 // pred_fallthru
      _
    // Predicated region
    $region54: #{tpu_custom_call.1} parent=1 // pred_check
      _
    $region55: #{tpu_custom_call.1} parent=1 // pred_check_branch
      %1591 = sbr.rel (0) target = $region57
    $region56: #{tpu_custom_call.1} parent=1 // pred_region
      %1592 = dma.done [#allocation4], 256
    $region57: #{tpu_custom_call.1} parent=1 // pred_fallthru
      _
    // Predicated region
    $region58: #{tpu_custom_call.1} parent=1 // pred_check
      _
    $region59: #{tpu_custom_call.1} parent=1 // pred_check_branch
      %1594 = sbr.rel (0) target = $region61
    $region60: #{tpu_custom_call.1} parent=1 // pred_region
      %1595 = dma.done [#allocation13], 64
    $region61: #{tpu_custom_call.1} parent=1 // pred_fallthru
      _
    %1596 = vsyncpa [#allocation3], 1
    %1597 = vsyncpa [#allocation6], 1
    %1598 = vsyncpa [#allocation9], 1
    %1599 = vsyncpa [#allocation4], 1
    %1600 = vsyncpa [#allocation13], 1

</llo_original>
